<compile_context>
chip_gen: v7x
topology: tpu7x:2x2x1
jax: 0.10.0
libtpu: 0.0.40
codegen_flags: <defaults>
</compile_context>

<pallas_src>
import functools

import jax
import jax.numpy as jnp
from jax.experimental import pallas as pl
from jax.experimental.pallas import tpu as pltpu

C_IN, C_STEM, C_MID, C_OUT = 3, 32, 16, 64
K_STEM = 7 * 7 * C_IN        # 147 : packed contraction dim of the stem conv
K_3x3 = 9 * C_MID            # 144 : packed contraction dim of the 3x3 conv


# ------------------------------ Pallas kernel -------------------------------

def _encoder_kernel(xcol_ref, wstem_ref, bstem_ref,
                    w1_ref, b1_ref, w2_ref, b2_ref,
                    w3_ref, b3_ref, wsc_ref, bsc_ref,
                    out_ref, *, bb, ph, pw):
    """Whole ImageEncoder forward for `bb` images (one grid step).

    xcol_ref : (bb*4*ph*pw, 147) bf16 stem im2col; rows ordered per image as
               (row-parity, col-parity, p, q) so the stride-2 maxpool needs
               only zero-shifted slices.
    """
    f32, bf16 = jnp.float32, jnp.bfloat16
    m_pool = bb * ph * pw                     # rows after maxpool (bb * 64)

    # ---- stem: ONE K-packed bf16 matmul (7x7/s2 conv, BN folded), ReLU ------
    y = jnp.dot(xcol_ref[...], wstem_ref[...], preferred_element_type=f32)
    y = jnp.maximum(y + bstem_ref[...], 0.0)                 # (bb*256, 32) f32
    y = y.reshape(bb, 2, 2, ph, pw, C_STEM)   # [b, rp, cp, p, q, c] = conv(2p+rp, 2q+cp)

    # ---- 3x3/s2/pad1 maxpool: zero pad is safe because y >= 0 (post-ReLU) ---
    y_e, y_o = y[:, :, 0], y[:, :, 1]                         # conv cols 2q / 2q+1
    zq = jnp.zeros_like(y_o[:, :, :, :1, :])
    y_o_sh = jnp.concatenate([zq, y_o[:, :, :, :-1, :]], axis=3)   # conv col 2q-1
    cm = jnp.maximum(jnp.maximum(y_e, y_o), y_o_sh)           # (bb, 2, ph, pw, 32)
    cm_e, cm_o = cm[:, 0], cm[:, 1]                           # conv rows 2p / 2p+1
    zp = jnp.zeros_like(cm_o[:, :1])
    cm_o_sh = jnp.concatenate([zp, cm_o[:, :-1]], axis=1)     # conv row 2p-1
    pooled = jnp.maximum(jnp.maximum(cm_e, cm_o), cm_o_sh)    # (bb, ph, pw, 32)

    x2d = pooled.reshape(m_pool, C_STEM).astype(bf16)         # shared bf16 LHS

    # ---- bottleneck 1x1 reduce + 1x1 shortcut (shared LHS, BN folded) -------
    h1 = jnp.dot(x2d, w1_ref[...], preferred_element_type=f32)
    h1 = jnp.maximum(h1 + b1_ref[...], 0.0)                   # (m_pool, 16)
    sc = jnp.dot(x2d, wsc_ref[...], preferred_element_type=f32) + bsc_ref[...]

    # ---- 3x3/pad1 conv as ONE K-packed matmul: 9 shifted taps along lanes ---
    h1s = h1.reshape(bb, ph, pw, C_MID)
    zr = jnp.zeros((bb, 1, pw, C_MID), f32)
    h1r = jnp.concatenate([zr, h1s, zr], axis=1)              # (bb, ph+2, pw, 16)
    zc = jnp.zeros((bb, ph + 2, 1, C_MID), f32)
    h1p = jnp.concatenate([zc, h1r, zc], axis=2)              # (bb, ph+2, pw+2, 16)
    taps = [h1p[:, i:i + ph, j:j + pw, :] for i in range(3) for j in range(3)]
    lhs = jnp.concatenate(taps, axis=-1).reshape(m_pool, K_3x3).astype(bf16)
    h2 = jnp.dot(lhs, w2_ref[...], preferred_element_type=f32)
    h2 = jnp.maximum(h2 + b2_ref[...], 0.0)                   # (m_pool, 16)

    # ---- 1x1 expand, residual add, ReLU --------------------------------------
    h3 = jnp.dot(h2.astype(bf16), w3_ref[...],
                 preferred_element_type=f32) + b3_ref[...]    # (m_pool, 64)
    yb = jnp.maximum(h3 + sc, 0.0)

    # ---- pooler: per-image global average pool -------------------------------
    out_ref[...] = jnp.mean(yb.reshape(bb, ph * pw, C_OUT), axis=1, keepdims=True)


# --------------------------------- wrapper ----------------------------------

def _pick_block_batch(B):
    # Batch several images per grid step (amortize per-step overhead + feed the
    # MXU larger M), but keep >= 2 grid steps when possible: v7x has two
    # TensorCores and a 1-step grid would serialize onto one of them.
    for cand in (8, 4, 2, 1):
        if B % cand == 0 and B // cand >= 2:
            return cand
    return B          # B == 1: single step


def image_encoder_forward(x_nchw, params):
    x = jnp.transpose(x_nchw, (0, 2, 3, 1)).astype(jnp.float32)      # NHWC
    B, H, W, cin = x.shape
    assert cin == C_IN, cin

    # stem geometry: 7x7 / stride-2 / pad-3 conv, then 3x3 / stride-2 / pad-1 pool
    ch, cw = (H + 6 - 7) // 2 + 1, (W + 6 - 7) // 2 + 1              # (16, 16)
    assert ch % 2 == 0 and cw % 2 == 0, (ch, cw)
    ph, pw = ch // 2, cw // 2                                        # (8, 8)

    # --- stem im2col (wrapper; ~75 KB/image in bf16 -- K = 147 is lane-dense) ---
    xp = jnp.pad(x, ((0, 0), (3, 3), (3, 3), (0, 0)))
    taps = [xp[:, ki:ki + 2 * (ch - 1) + 1:2, kj:kj + 2 * (cw - 1) + 1:2, :]
            for ki in range(7) for kj in range(7)]
    patches = jnp.concatenate(taps, axis=-1)                         # (B, ch, cw, 147)
    # reorder conv-output positions to (row-parity, col-parity, p, q) so the
    # kernel's stride-2 maxpool needs only zero-shifted slices.
    pr = patches.reshape(B, ph, 2, pw, 2, K_STEM)
    xcol = (pr.transpose(0, 2, 4, 1, 3, 5)
              .reshape(B * ch * cw, K_STEM).astype(jnp.bfloat16))

    # --- fold BN scales into bf16 weights; biases stay f32 -----------------------
    wstem = ((jnp.transpose(params["stem_w"], (2, 3, 1, 0)).reshape(K_STEM, C_STEM))
             * params["stem_s"]).astype(jnp.bfloat16)
    bstem = params["stem_b"].reshape(1, C_STEM)
    w1 = (params["b_w1"][:, :, 0, 0].T * params["b_s1"]).astype(jnp.bfloat16)
    b1 = params["b_b1"].reshape(1, C_MID)
    w2 = ((jnp.transpose(params["b_w2"], (2, 3, 1, 0)).reshape(K_3x3, C_MID))
          * params["b_s2"]).astype(jnp.bfloat16)
    b2 = params["b_b2"].reshape(1, C_MID)
    w3 = (params["b_w3"][:, :, 0, 0].T * params["b_s3"]).astype(jnp.bfloat16)
    b3 = params["b_b3"].reshape(1, C_OUT)
    wsc = (params["sc_w"][:, :, 0, 0].T * params["sc_s"]).astype(jnp.bfloat16)
    bsc = params["sc_b"].reshape(1, C_OUT)

    bb = _pick_block_batch(B)
    m_blk = bb * ch * cw
    kern = functools.partial(_encoder_kernel, bb=bb, ph=ph, pw=pw)

    out = pl.pallas_call(
        kern,
        out_shape=jax.ShapeDtypeStruct((B, 1, C_OUT), jnp.float32),
        grid=(B // bb,),
        in_specs=[
            pl.BlockSpec((m_blk, K_STEM), lambda b: (b, 0)),
            pl.BlockSpec((K_STEM, C_STEM), lambda b: (0, 0)),
            pl.BlockSpec((1, C_STEM), lambda b: (0, 0)),
            pl.BlockSpec((C_STEM, C_MID), lambda b: (0, 0)),
            pl.BlockSpec((1, C_MID), lambda b: (0, 0)),
            pl.BlockSpec((K_3x3, C_MID), lambda b: (0, 0)),
            pl.BlockSpec((1, C_MID), lambda b: (0, 0)),
            pl.BlockSpec((C_MID, C_OUT), lambda b: (0, 0)),
            pl.BlockSpec((1, C_OUT), lambda b: (0, 0)),
            pl.BlockSpec((C_STEM, C_OUT), lambda b: (0, 0)),
            pl.BlockSpec((1, C_OUT), lambda b: (0, 0)),
        ],
        out_specs=pl.BlockSpec((bb, 1, C_OUT), lambda b: (b, 0, 0)),
        compiler_params=pltpu.CompilerParams(
            dimension_semantics=("parallel",)),   # batch blocks across TCs on v7x
    )(xcol, wstem, bstem, w1, b1, w2, b2, w3, b3, wsc, bsc)

    # pooler_output is (B, C, 1, 1); .squeeze() drops all singleton dims
    # (including batch when B == 1) -- mirrored exactly.
    return jnp.squeeze(out)


# --------------------------- parameters / reference -------------------------

def init_params(key):
    ks = list(jax.random.split(key, 16))

    def conv_w(k, o, c, kh, kw):
        fan_in = c * kh * kw
        return (jax.random.normal(k, (o, c, kh, kw), jnp.float32)
                * (2.0 / fan_in) ** 0.5)

    def bn(kg, kb, c, eps=1e-5):
        gamma = 1.0 + 0.1 * jax.random.normal(kg, (c,), jnp.float32)
        beta = 0.1 * jax.random.normal(kb, (c,), jnp.float32)
        mean = jnp.zeros((c,), jnp.float32)
        var = jnp.ones((c,), jnp.float32)
        scale = gamma / jnp.sqrt(var + eps)
        bias = beta - mean * scale
        return scale, bias

    p = {}
    p["stem_w"] = conv_w(ks[0], C_STEM, C_IN, 7, 7)
    p["stem_s"], p["stem_b"] = bn(ks[1], ks[2], C_STEM)
    p["b_w1"] = conv_w(ks[3], C_MID, C_STEM, 1, 1)
    p["b_s1"], p["b_b1"] = bn(ks[4], ks[5], C_MID)
    p["b_w2"] = conv_w(ks[6], C_MID, C_MID, 3, 3)
    p["b_s2"], p["b_b2"] = bn(ks[7], ks[8], C_MID)
    p["b_w3"] = conv_w(ks[9], C_OUT, C_MID, 1, 1)
    p["b_s3"], p["b_b3"] = bn(ks[10], ks[11], C_OUT)
    p["sc_w"] = conv_w(ks[12], C_OUT, C_STEM, 1, 1)
    p["sc_s"], p["sc_b"] = bn(ks[13], ks[14], C_OUT)
    return p


def reference_forward(x_nchw, params):
    """Pure-JAX f32 reference for correctness checking."""
    x = jnp.transpose(x_nchw, (0, 2, 3, 1)).astype(jnp.float32)

    def conv(x, w, s, b, stride, pad, relu):
        y = jax.lax.conv_general_dilated(
            x, jnp.transpose(w, (2, 3, 1, 0)),
            window_strides=(stride, stride),
            padding=((pad, pad), (pad, pad)),
            dimension_numbers=("NHWC", "HWIO", "NHWC"))
        y = y * s + b
        return jnp.maximum(y, 0.0) if relu else y

    x = conv(x, params["stem_w"], params["stem_s"], params["stem_b"], 2, 3, True)
    x = jax.lax.reduce_window(x, -jnp.inf, jax.lax.max,
                              (1, 3, 3, 1), (1, 2, 2, 1),
                              ((0, 0), (1, 1), (1, 1), (0, 0)))
    h = conv(x, params["b_w1"], params["b_s1"], params["b_b1"], 1, 0, True)
    h = conv(h, params["b_w2"], params["b_s2"], params["b_b2"], 1, 1, True)
    h = conv(h, params["b_w3"], params["b_s3"], params["b_b3"], 1, 0, False)
    sc = conv(x, params["sc_w"], params["sc_s"], params["sc_b"], 1, 0, False)
    y = jnp.maximum(h + sc, 0.0)
    return jnp.squeeze(jnp.mean(y, axis=(1, 2)))


if __name__ == "__main__":
    key = jax.random.PRNGKey(0)
    k_x, k_p = jax.random.split(key)
    # small image batch: (batch=2, channels=3, 32x32), NCHW like the PyTorch module
    x = jax.random.normal(k_x, (2, C_IN, 32, 32), jnp.float32)
    params = init_params(k_p)

    out = jax.block_until_ready(jax.jit(image_encoder_forward)(x, params))
    assert out.shape == (2, C_OUT), out.shape

    ref = jax.block_until_ready(reference_forward(x, params))
    # tolerance accounts for bf16 MXU inputs in the stem / bottleneck matmuls
    assert jnp.allclose(out, ref, atol=5e-2, rtol=5e-2), (
        float(jnp.max(jnp.abs(out - ref))))

    print("KERNEL_OK")
</pallas_src>

<mosaic_0001>
module attributes {stable_mosaic.version = 11 : i64} {
  func.func @_encoder_kernel(%arg0: i32, %arg1: memref<256x147xbf16, #tpu.memory_space<vmem>>, %arg2: memref<147x32xbf16, #tpu.memory_space<vmem>>, %arg3: memref<1x32xf32, #tpu.memory_space<vmem>>, %arg4: memref<32x16xbf16, #tpu.memory_space<vmem>>, %arg5: memref<1x16xf32, #tpu.memory_space<vmem>>, %arg6: memref<144x16xbf16, #tpu.memory_space<vmem>>, %arg7: memref<1x16xf32, #tpu.memory_space<vmem>>, %arg8: memref<16x64xbf16, #tpu.memory_space<vmem>>, %arg9: memref<1x64xf32, #tpu.memory_space<vmem>>, %arg10: memref<32x64xbf16, #tpu.memory_space<vmem>>, %arg11: memref<1x64xf32, #tpu.memory_space<vmem>>, %arg12: memref<1x1x64xf32, #tpu.memory_space<vmem>>) attributes {dimension_semantics = [#tpu.dimension_semantics<parallel>], iteration_bounds = array<i64: 2>, scalar_prefetch = 0 : i64, scratch_operands = 0 : i64, tpu.core_type = #tpu.core_type<tc>, window_params = [{transform_indices = @transform_0, window_bounds = array<i64: 256, 147>}, {pipeline_mode = #tpu.pipeline_mode<synchronous>, transform_indices = @transform_1, window_bounds = array<i64: 147, 32>}, {pipeline_mode = #tpu.pipeline_mode<synchronous>, transform_indices = @transform_2, window_bounds = array<i64: 1, 32>}, {pipeline_mode = #tpu.pipeline_mode<synchronous>, transform_indices = @transform_3, window_bounds = array<i64: 32, 16>}, {pipeline_mode = #tpu.pipeline_mode<synchronous>, transform_indices = @transform_4, window_bounds = array<i64: 1, 16>}, {pipeline_mode = #tpu.pipeline_mode<synchronous>, transform_indices = @transform_5, window_bounds = array<i64: 144, 16>}, {pipeline_mode = #tpu.pipeline_mode<synchronous>, transform_indices = @transform_6, window_bounds = array<i64: 1, 16>}, {pipeline_mode = #tpu.pipeline_mode<synchronous>, transform_indices = @transform_7, window_bounds = array<i64: 16, 64>}, {pipeline_mode = #tpu.pipeline_mode<synchronous>, transform_indices = @transform_8, window_bounds = array<i64: 1, 64>}, {pipeline_mode = #tpu.pipeline_mode<synchronous>, transform_indices = @transform_9, window_bounds = array<i64: 32, 64>}, {pipeline_mode = #tpu.pipeline_mode<synchronous>, transform_indices = @transform_10, window_bounds = array<i64: 1, 64>}, {transform_indices = @transform_11, window_bounds = array<i64: 1, 1, 64>}]} {
    %c0 = arith.constant 0 : index
    %c0_0 = arith.constant 0 : index
    %0 = vector.load %arg1[%c0, %c0_0] : memref<256x147xbf16, #tpu.memory_space<vmem>>, vector<256x147xbf16>
    %c0_1 = arith.constant 0 : index
    %c0_2 = arith.constant 0 : index
    %1 = vector.load %arg2[%c0_1, %c0_2] : memref<147x32xbf16, #tpu.memory_space<vmem>>, vector<147x32xbf16>
    %cst = arith.constant dense<0.000000e+00> : vector<256x32xf32>
    %2 = tpu.matmul %0, %1, %cst {dimension_numbers = #tpu.dot_dimension_numbers<[1], [0], [0], [1], [0, 0, 1, 1], [], []>} : vector<256x147xbf16>, vector<147x32xbf16>, vector<256x32xf32> -> vector<256x32xf32>
    %c0_3 = arith.constant 0 : index
    %c0_4 = arith.constant 0 : index
    %3 = vector.load %arg3[%c0_3, %c0_4] : memref<1x32xf32, #tpu.memory_space<vmem>>, vector<1x32xf32>
    %4 = vector.broadcast %3 : vector<1x32xf32> to vector<256x32xf32>
    %5 = arith.addf %2, %4 : vector<256x32xf32>
    %cst_5 = arith.constant 0.000000e+00 : f32
    %6 = vector.broadcast %cst_5 : f32 to vector<256x32xf32>
    %7 = arith.maximumf %5, %6 : vector<256x32xf32>
    %8 = vector.shape_cast %7 : vector<256x32xf32> to vector<1x2x2x8x8x32xf32>
    %9 = vector.extract_strided_slice %8 {offsets = [0, 0, 0, 0, 0, 0], sizes = [1, 2, 1, 8, 8, 32], strides = [1, 1, 1, 1, 1, 1]} : vector<1x2x2x8x8x32xf32> to vector<1x2x1x8x8x32xf32>
    %10 = vector.shape_cast %9 : vector<1x2x1x8x8x32xf32> to vector<1x2x8x8x32xf32>
    %11 = vector.extract_strided_slice %8 {offsets = [0, 0, 1, 0, 0, 0], sizes = [1, 2, 1, 8, 8, 32], strides = [1, 1, 1, 1, 1, 1]} : vector<1x2x2x8x8x32xf32> to vector<1x2x1x8x8x32xf32>
    %12 = vector.shape_cast %11 : vector<1x2x1x8x8x32xf32> to vector<1x2x8x8x32xf32>
    %cst_6 = arith.constant 0.000000e+00 : f32
    %13 = vector.broadcast %cst_6 : f32 to vector<1x2x8x1x32xf32>
    %14 = vector.extract_strided_slice %12 {offsets = [0, 0, 0, 0, 0], sizes = [1, 2, 8, 7, 32], strides = [1, 1, 1, 1, 1]} : vector<1x2x8x8x32xf32> to vector<1x2x8x7x32xf32>
    %15 = tpu.concatenate %13, %14 in 3 : vector<1x2x8x1x32xf32>, vector<1x2x8x7x32xf32> -> vector<1x2x8x8x32xf32>
    %16 = arith.maximumf %10, %12 : vector<1x2x8x8x32xf32>
    %17 = arith.maximumf %16, %15 : vector<1x2x8x8x32xf32>
    %18 = vector.extract_strided_slice %17 {offsets = [0, 0, 0, 0, 0], sizes = [1, 1, 8, 8, 32], strides = [1, 1, 1, 1, 1]} : vector<1x2x8x8x32xf32> to vector<1x1x8x8x32xf32>
    %19 = vector.shape_cast %18 : vector<1x1x8x8x32xf32> to vector<1x8x8x32xf32>
    %20 = vector.extract_strided_slice %17 {offsets = [0, 1, 0, 0, 0], sizes = [1, 1, 8, 8, 32], strides = [1, 1, 1, 1, 1]} : vector<1x2x8x8x32xf32> to vector<1x1x8x8x32xf32>
    %21 = vector.shape_cast %20 : vector<1x1x8x8x32xf32> to vector<1x8x8x32xf32>
    %cst_7 = arith.constant 0.000000e+00 : f32
    %22 = vector.broadcast %cst_7 : f32 to vector<1x1x8x32xf32>
    %23 = vector.extract_strided_slice %21 {offsets = [0, 0, 0, 0], sizes = [1, 7, 8, 32], strides = [1, 1, 1, 1]} : vector<1x8x8x32xf32> to vector<1x7x8x32xf32>
    %24 = tpu.concatenate %22, %23 in 1 : vector<1x1x8x32xf32>, vector<1x7x8x32xf32> -> vector<1x8x8x32xf32>
    %25 = arith.maximumf %19, %21 : vector<1x8x8x32xf32>
    %26 = arith.maximumf %25, %24 : vector<1x8x8x32xf32>
    %27 = vector.shape_cast %26 : vector<1x8x8x32xf32> to vector<64x32xf32>
    %28 = arith.truncf %27 : vector<64x32xf32> to vector<64x32xbf16>
    %c0_8 = arith.constant 0 : index
    %c0_9 = arith.constant 0 : index
    %29 = vector.load %arg4[%c0_8, %c0_9] : memref<32x16xbf16, #tpu.memory_space<vmem>>, vector<32x16xbf16>
    %cst_10 = arith.constant dense<0.000000e+00> : vector<64x16xf32>
    %30 = tpu.matmul %28, %29, %cst_10 {dimension_numbers = #tpu.dot_dimension_numbers<[1], [0], [0], [1], [0, 0, 1, 1], [], []>} : vector<64x32xbf16>, vector<32x16xbf16>, vector<64x16xf32> -> vector<64x16xf32>
    %c0_11 = arith.constant 0 : index
    %c0_12 = arith.constant 0 : index
    %31 = vector.load %arg5[%c0_11, %c0_12] : memref<1x16xf32, #tpu.memory_space<vmem>>, vector<1x16xf32>
    %32 = vector.broadcast %31 : vector<1x16xf32> to vector<64x16xf32>
    %33 = arith.addf %30, %32 : vector<64x16xf32>
    %cst_13 = arith.constant 0.000000e+00 : f32
    %34 = vector.broadcast %cst_13 : f32 to vector<64x16xf32>
    %35 = arith.maximumf %33, %34 : vector<64x16xf32>
    %c0_14 = arith.constant 0 : index
    %c0_15 = arith.constant 0 : index
    %36 = vector.load %arg10[%c0_14, %c0_15] : memref<32x64xbf16, #tpu.memory_space<vmem>>, vector<32x64xbf16>
    %cst_16 = arith.constant dense<0.000000e+00> : vector<64x64xf32>
    %37 = tpu.matmul %28, %36, %cst_16 {dimension_numbers = #tpu.dot_dimension_numbers<[1], [0], [0], [1], [0, 0, 1, 1], [], []>} : vector<64x32xbf16>, vector<32x64xbf16>, vector<64x64xf32> -> vector<64x64xf32>
    %c0_17 = arith.constant 0 : index
    %c0_18 = arith.constant 0 : index
    %38 = vector.load %arg11[%c0_17, %c0_18] : memref<1x64xf32, #tpu.memory_space<vmem>>, vector<1x64xf32>
    %39 = vector.broadcast %38 : vector<1x64xf32> to vector<64x64xf32>
    %40 = arith.addf %37, %39 : vector<64x64xf32>
    %41 = vector.shape_cast %35 : vector<64x16xf32> to vector<1x8x8x16xf32>
    %cst_19 = arith.constant 0.000000e+00 : f32
    %42 = vector.broadcast %cst_19 : f32 to vector<1x1x8x16xf32>
    %43 = tpu.concatenate %42, %41, %42 in 1 : vector<1x1x8x16xf32>, vector<1x8x8x16xf32>, vector<1x1x8x16xf32> -> vector<1x10x8x16xf32>
    %cst_20 = arith.constant 0.000000e+00 : f32
    %44 = vector.broadcast %cst_20 : f32 to vector<1x10x1x16xf32>
    %45 = tpu.concatenate %44, %43, %44 in 2 : vector<1x10x1x16xf32>, vector<1x10x8x16xf32>, vector<1x10x1x16xf32> -> vector<1x10x10x16xf32>
    %46 = vector.extract_strided_slice %45 {offsets = [0, 0, 0, 0], sizes = [1, 8, 8, 16], strides = [1, 1, 1, 1]} : vector<1x10x10x16xf32> to vector<1x8x8x16xf32>
    %47 = vector.extract_strided_slice %45 {offsets = [0, 0, 1, 0], sizes = [1, 8, 8, 16], strides = [1, 1, 1, 1]} : vector<1x10x10x16xf32> to vector<1x8x8x16xf32>
    %48 = vector.extract_strided_slice %45 {offsets = [0, 0, 2, 0], sizes = [1, 8, 8, 16], strides = [1, 1, 1, 1]} : vector<1x10x10x16xf32> to vector<1x8x8x16xf32>
    %49 = vector.extract_strided_slice %45 {offsets = [0, 1, 0, 0], sizes = [1, 8, 8, 16], strides = [1, 1, 1, 1]} : vector<1x10x10x16xf32> to vector<1x8x8x16xf32>
    %50 = vector.extract_strided_slice %45 {offsets = [0, 1, 1, 0], sizes = [1, 8, 8, 16], strides = [1, 1, 1, 1]} : vector<1x10x10x16xf32> to vector<1x8x8x16xf32>
    %51 = vector.extract_strided_slice %45 {offsets = [0, 1, 2, 0], sizes = [1, 8, 8, 16], strides = [1, 1, 1, 1]} : vector<1x10x10x16xf32> to vector<1x8x8x16xf32>
    %52 = vector.extract_strided_slice %45 {offsets = [0, 2, 0, 0], sizes = [1, 8, 8, 16], strides = [1, 1, 1, 1]} : vector<1x10x10x16xf32> to vector<1x8x8x16xf32>
    %53 = vector.extract_strided_slice %45 {offsets = [0, 2, 1, 0], sizes = [1, 8, 8, 16], strides = [1, 1, 1, 1]} : vector<1x10x10x16xf32> to vector<1x8x8x16xf32>
    %54 = vector.extract_strided_slice %45 {offsets = [0, 2, 2, 0], sizes = [1, 8, 8, 16], strides = [1, 1, 1, 1]} : vector<1x10x10x16xf32> to vector<1x8x8x16xf32>
    %55 = tpu.concatenate %46, %47, %48, %49, %50, %51, %52, %53, %54 in 3 : vector<1x8x8x16xf32>, vector<1x8x8x16xf32>, vector<1x8x8x16xf32>, vector<1x8x8x16xf32>, vector<1x8x8x16xf32>, vector<1x8x8x16xf32>, vector<1x8x8x16xf32>, vector<1x8x8x16xf32>, vector<1x8x8x16xf32> -> vector<1x8x8x144xf32>
    %56 = vector.shape_cast %55 : vector<1x8x8x144xf32> to vector<64x144xf32>
    %57 = arith.truncf %56 : vector<64x144xf32> to vector<64x144xbf16>
    %c0_21 = arith.constant 0 : index
    %c0_22 = arith.constant 0 : index
    %58 = vector.load %arg6[%c0_21, %c0_22] : memref<144x16xbf16, #tpu.memory_space<vmem>>, vector<144x16xbf16>
    %cst_23 = arith.constant dense<0.000000e+00> : vector<64x16xf32>
    %59 = tpu.matmul %57, %58, %cst_23 {dimension_numbers = #tpu.dot_dimension_numbers<[1], [0], [0], [1], [0, 0, 1, 1], [], []>} : vector<64x144xbf16>, vector<144x16xbf16>, vector<64x16xf32> -> vector<64x16xf32>
    %c0_24 = arith.constant 0 : index
    %c0_25 = arith.constant 0 : index
    %60 = vector.load %arg7[%c0_24, %c0_25] : memref<1x16xf32, #tpu.memory_space<vmem>>, vector<1x16xf32>
    %61 = vector.broadcast %60 : vector<1x16xf32> to vector<64x16xf32>
    %62 = arith.addf %59, %61 : vector<64x16xf32>
    %cst_26 = arith.constant 0.000000e+00 : f32
    %63 = vector.broadcast %cst_26 : f32 to vector<64x16xf32>
    %64 = arith.maximumf %62, %63 : vector<64x16xf32>
    %65 = arith.truncf %64 : vector<64x16xf32> to vector<64x16xbf16>
    %c0_27 = arith.constant 0 : index
    %c0_28 = arith.constant 0 : index
    %66 = vector.load %arg8[%c0_27, %c0_28] : memref<16x64xbf16, #tpu.memory_space<vmem>>, vector<16x64xbf16>
    %cst_29 = arith.constant dense<0.000000e+00> : vector<64x64xf32>
    %67 = tpu.matmul %65, %66, %cst_29 {dimension_numbers = #tpu.dot_dimension_numbers<[1], [0], [0], [1], [0, 0, 1, 1], [], []>} : vector<64x16xbf16>, vector<16x64xbf16>, vector<64x64xf32> -> vector<64x64xf32>
    %c0_30 = arith.constant 0 : index
    %c0_31 = arith.constant 0 : index
    %68 = vector.load %arg9[%c0_30, %c0_31] : memref<1x64xf32, #tpu.memory_space<vmem>>, vector<1x64xf32>
    %69 = vector.broadcast %68 : vector<1x64xf32> to vector<64x64xf32>
    %70 = arith.addf %67, %69 : vector<64x64xf32>
    %71 = arith.addf %70, %40 : vector<64x64xf32>
    %cst_32 = arith.constant 0.000000e+00 : f32
    %72 = vector.broadcast %cst_32 : f32 to vector<64x64xf32>
    %73 = arith.maximumf %71, %72 : vector<64x64xf32>
    %74 = vector.shape_cast %73 : vector<64x64xf32> to vector<1x64x64xf32>
    %cst_33 = arith.constant dense<0.000000e+00> : vector<1x64xf32>
    %75 = vector.multi_reduction <add>, %74, %cst_33 [1] : vector<1x64x64xf32> to vector<1x64xf32>
    %76 = vector.shape_cast %75 : vector<1x64xf32> to vector<1x1x64xf32>
    %cst_34 = arith.constant 6.400000e+01 : f32
    %77 = vector.broadcast %cst_34 : f32 to vector<1x1x64xf32>
    %78 = arith.divf %76, %77 : vector<1x1x64xf32>
    %c0_35 = arith.constant 0 : index
    %c0_36 = arith.constant 0 : index
    %c0_37 = arith.constant 0 : index
    %79 = vector.load %arg12[%c0_35, %c0_36, %c0_37] : memref<1x1x64xf32, #tpu.memory_space<vmem>>, vector<1x1x64xf32>
    tpu.vector_store %arg12[%c0_35, %c0_36, %c0_37], %78 {strides = array<i32>} : memref<1x1x64xf32, #tpu.memory_space<vmem>>, vector<1x1x64xf32>,
    return
  }
  func.func @transform_0(%arg0: i32) -> (i32, i32) {
    %c0_i32 = arith.constant 0 : i32
    %c0_i32_0 = arith.constant 0 : i32
    return %arg0, %c0_i32 : i32, i32
  }
  func.func @transform_1(%arg0: i32) -> (i32, i32) {
    %c0_i32 = arith.constant 0 : i32
    %c0_i32_0 = arith.constant 0 : i32
    %c0_i32_1 = arith.constant 0 : i32
    return %c0_i32, %c0_i32_0 : i32, i32
  }
  func.func @transform_2(%arg0: i32) -> (i32, i32) {
    %c0_i32 = arith.constant 0 : i32
    %c0_i32_0 = arith.constant 0 : i32
    %c0_i32_1 = arith.constant 0 : i32
    return %c0_i32, %c0_i32_0 : i32, i32
  }
  func.func @transform_3(%arg0: i32) -> (i32, i32) {
    %c0_i32 = arith.constant 0 : i32
    %c0_i32_0 = arith.constant 0 : i32
    %c0_i32_1 = arith.constant 0 : i32
    return %c0_i32, %c0_i32_0 : i32, i32
  }
  func.func @transform_4(%arg0: i32) -> (i32, i32) {
    %c0_i32 = arith.constant 0 : i32
    %c0_i32_0 = arith.constant 0 : i32
    %c0_i32_1 = arith.constant 0 : i32
    return %c0_i32, %c0_i32_0 : i32, i32
  }
  func.func @transform_5(%arg0: i32) -> (i32, i32) {
    %c0_i32 = arith.constant 0 : i32
    %c0_i32_0 = arith.constant 0 : i32
    %c0_i32_1 = arith.constant 0 : i32
    return %c0_i32, %c0_i32_0 : i32, i32
  }
  func.func @transform_6(%arg0: i32) -> (i32, i32) {
    %c0_i32 = arith.constant 0 : i32
    %c0_i32_0 = arith.constant 0 : i32
    %c0_i32_1 = arith.constant 0 : i32
    return %c0_i32, %c0_i32_0 : i32, i32
  }
  func.func @transform_7(%arg0: i32) -> (i32, i32) {
    %c0_i32 = arith.constant 0 : i32
    %c0_i32_0 = arith.constant 0 : i32
    %c0_i32_1 = arith.constant 0 : i32
    return %c0_i32, %c0_i32_0 : i32, i32
  }
  func.func @transform_8(%arg0: i32) -> (i32, i32) {
    %c0_i32 = arith.constant 0 : i32
    %c0_i32_0 = arith.constant 0 : i32
    %c0_i32_1 = arith.constant 0 : i32
    return %c0_i32, %c0_i32_0 : i32, i32
  }
  func.func @transform_9(%arg0: i32) -> (i32, i32) {
    %c0_i32 = arith.constant 0 : i32
    %c0_i32_0 = arith.constant 0 : i32
    %c0_i32_1 = arith.constant 0 : i32
    return %c0_i32, %c0_i32_0 : i32, i32
  }
  func.func @transform_10(%arg0: i32) -> (i32, i32) {
    %c0_i32 = arith.constant 0 : i32
    %c0_i32_0 = arith.constant 0 : i32
    %c0_i32_1 = arith.constant 0 : i32
    return %c0_i32, %c0_i32_0 : i32, i32
  }
  func.func @transform_11(%arg0: i32) -> (i32, i32, i32) {
    %c0_i32 = arith.constant 0 : i32
    %c0_i32_0 = arith.constant 0 : i32
    %c0_i32_1 = arith.constant 0 : i32
    return %arg0, %c0_i32, %c0_i32_0 : i32, i32, i32
  }
}

</mosaic_0001>

<llo_original>
// kernel: image_encoder_forward.1
$region0: #{image_encoder_forward.1}
  #allocation0 [shape = 'u32[]', space=smem, size = 0x4, offset = 0x4, fixed_abs, tag = 'smem constant byte address 0x4 - core index']
  #allocation1 [shape = 'u32[144,128]{1,0:T(1,128)}', space=vmem, size = 0x12000, scoped, tag = 'internal scratch']
  %s0 = inlined_call_operand.vmem [shape: bf16[512,147], index: 0, kind: input, shape index: {}]
  %s1 = inlined_call_operand.vmem [shape: bf16[147,32], index: 1, kind: input, shape index: {}]
  %s2 = inlined_call_operand.vmem [shape: f32[1,32], index: 2, kind: input, shape index: {}]
  %s3 = inlined_call_operand.vmem [shape: bf16[32,16], index: 3, kind: input, shape index: {}]
  %s4 = inlined_call_operand.vmem [shape: f32[1,16], index: 4, kind: input, shape index: {}]
  %s5 = inlined_call_operand.vmem [shape: bf16[144,16], index: 5, kind: input, shape index: {}]
  %s6 = inlined_call_operand.vmem [shape: f32[1,16], index: 6, kind: input, shape index: {}]
  %s7 = inlined_call_operand.vmem [shape: bf16[16,64], index: 7, kind: input, shape index: {}]
  %s8 = inlined_call_operand.vmem [shape: f32[1,64], index: 8, kind: input, shape index: {}]
  %s9 = inlined_call_operand.vmem [shape: bf16[32,64], index: 9, kind: input, shape index: {}]
  %s10 = inlined_call_operand.vmem [shape: f32[1,64], index: 10, kind: input, shape index: {}]
  %s11 = inlined_call_operand.hbm [shape: f32[2,1,64], index: 11, kind: output, shape index: {}]
  %s12 = sld [smem:[#allocation0]]
  $region77: #{image_encoder_forward.1} parent=0
    _
  %s14 = ssub.s32 1, %s12
  %s15 = scalar_select 0, %s14, %s12
  $region1: #{image_encoder_forward.1} parent=0
    #allocation2 [shape = 'u8[1024]{0}', space=vmem, size = 0x400, scoped, tag = 'output window, operand 0']
    #allocation3 [shape = 's32[2]{0}', space=sflag, size = 0x8, scoped, tag = 'scoped memory for image_encoder_forward.1']
    %16 = vsyncpa [#allocation3], 0
    %s17 = scalar_lea.sflag [#allocation3], 1
    %18 = vsyncpa %s17, 0
    loop: start=0, step=1, limit=4
    $region2: #{image_encoder_forward.1} parent=1 // loop_pre_header
      _
    $region3: #{image_encoder_forward.1} parent=1 // loop_header
      %s20 = sphi 0, %s24
      %p21 = scmp.ge.s32.totalorder %s20, 4
      %s30 = sphi 0, %s32
      %s33 = sphi 0, %s30
      %s34 = sphi 0, %s33
      %s50 = sphi 0, %s34
      %s54 = sphi 0, %s54
      %s56 = sphi 0, %s54
      %s57 = sphi 0, %s56
      %s71 = sphi 0, %s57
      %s75 = sphi 0, %s75
      %s77 = sphi 0, %s75
      %s78 = sphi 0, %s77
      %s92 = sphi 0, %s78
      %s96 = sphi 0, %s96
      %s98 = sphi 0, %s96
      %s99 = sphi 0, %s98
      %s113 = sphi 0, %s99
      %s117 = sphi 0, %s117
      %s119 = sphi 0, %s117
      %s120 = sphi 0, %s119
      %s134 = sphi 0, %s120
      %s138 = sphi 0, %s138
      %s140 = sphi 0, %s138
      %s141 = sphi 0, %s140
      %s155 = sphi 0, %s141
      %s159 = sphi 0, %s159
      %s161 = sphi 0, %s159
      %s162 = sphi 0, %s161
      %s176 = sphi 0, %s162
      %s180 = sphi 0, %s180
      %s182 = sphi 0, %s180
      %s183 = sphi 0, %s182
      %s197 = sphi 0, %s183
      %s201 = sphi 0, %s201
      %s203 = sphi 0, %s201
      %s204 = sphi 0, %s203
      %s218 = sphi 0, %s204
      %s222 = sphi 0, %s222
      %s224 = sphi 0, %s222
      %s225 = sphi 0, %s224
      %s239 = sphi 0, %s225
      %s243 = sphi 0, %s243
      %s245 = sphi 0, %s243
      %s246 = sphi 0, %s245
      %s260 = sphi 0, %s246
      %s266 = sphi 0, %s268
      %s269 = sphi 0, %s266
      %s270 = sphi 0, %s269
      %s286 = sphi 0, %s270
    $region4: #{image_encoder_forward.1} parent=1 // loop_header_branch
      %23 = sbr.rel (%p21) target = $region8
    $region5: #{image_encoder_forward.1} parent=1 // loop_body
      %s25 = ssub.s32 %s20, 1
      %s26 = ssub.s32 %s20, 2
      %s27 = sadd.s32 %s20, 1
      %s28 = ssub.s32 %s20, %s27
      %p29 = scmp.eq.s32.totalorder %s28, 0
      %s31 = sadd.s32 %s30, 1
      %s32 = scalar_select %p29, %s30, %s31
      %p35 = pneg %p29
      %p36 = scmp.eq.s32.totalorder %s20, 1
      %p37 = por %p35, %p36
      %p38 = scmp.ne.s32.totalorder %s30, %s33
      %p39 = scmp.eq.s32.totalorder %s20, 0
      %p40 = por %p38, %p39
      %p41 = scmp.ne.s32.totalorder %s30, %s33
      %p42 = scmp.eq.s32.totalorder %s25, 1
      %p43 = por %p41, %p42
      %p44 = scmp.ne.s32.totalorder %s33, %s34
      %p45 = scmp.eq.s32.totalorder %s25, 0
      %p46 = por %p44, %p45
      %p47 = scmp.ne.s32.totalorder %s33, %s34
      %p48 = scmp.eq.s32.totalorder %s26, 1
      %p49 = por %p47, %p48
      %p51 = scmp.ne.s32.totalorder %s34, %s50
      %p52 = scmp.eq.s32.totalorder %s26, 0
      %p53 = por %p51, %p52
      %s55 = sadd.s32 %s54, 1
      %p58 = scmp.eq.s32.totalorder %s20, 1
      %p59 = scmp.ne.s32.totalorder %s54, %s56
      %p60 = scmp.eq.s32.totalorder %s20, 0
      %p61 = por %p59, %p60
      %p62 = scmp.ne.s32.totalorder %s54, %s56
      %p63 = scmp.eq.s32.totalorder %s25, 1
      %p64 = por %p62, %p63
      %p65 = scmp.ne.s32.totalorder %s56, %s57
      %p66 = scmp.eq.s32.totalorder %s25, 0
      %p67 = por %p65, %p66
      %p68 = scmp.ne.s32.totalorder %s56, %s57
      %p69 = scmp.eq.s32.totalorder %s26, 1
      %p70 = por %p68, %p69
      %p72 = scmp.ne.s32.totalorder %s57, %s71
      %p73 = scmp.eq.s32.totalorder %s26, 0
      %p74 = por %p72, %p73
      %s76 = sadd.s32 %s75, 1
      %p79 = scmp.eq.s32.totalorder %s20, 1
      %p80 = scmp.ne.s32.totalorder %s75, %s77
      %p81 = scmp.eq.s32.totalorder %s20, 0
      %p82 = por %p80, %p81
      %p83 = scmp.ne.s32.totalorder %s75, %s77
      %p84 = scmp.eq.s32.totalorder %s25, 1
      %p85 = por %p83, %p84
      %p86 = scmp.ne.s32.totalorder %s77, %s78
      %p87 = scmp.eq.s32.totalorder %s25, 0
      %p88 = por %p86, %p87
      %p89 = scmp.ne.s32.totalorder %s77, %s78
      %p90 = scmp.eq.s32.totalorder %s26, 1
      %p91 = por %p89, %p90
      %p93 = scmp.ne.s32.totalorder %s78, %s92
      %p94 = scmp.eq.s32.totalorder %s26, 0
      %p95 = por %p93, %p94
      %s97 = sadd.s32 %s96, 1
      %p100 = scmp.eq.s32.totalorder %s20, 1
      %p101 = scmp.ne.s32.totalorder %s96, %s98
      %p102 = scmp.eq.s32.totalorder %s20, 0
      %p103 = por %p101, %p102
      %p104 = scmp.ne.s32.totalorder %s96, %s98
      %p105 = scmp.eq.s32.totalorder %s25, 1
      %p106 = por %p104, %p105
      %p107 = scmp.ne.s32.totalorder %s98, %s99
      %p108 = scmp.eq.s32.totalorder %s25, 0
      %p109 = por %p107, %p108
      %p110 = scmp.ne.s32.totalorder %s98, %s99
      %p111 = scmp.eq.s32.totalorder %s26, 1
      %p112 = por %p110, %p111
      %p114 = scmp.ne.s32.totalorder %s99, %s113
      %p115 = scmp.eq.s32.totalorder %s26, 0
      %p116 = por %p114, %p115
      %s118 = sadd.s32 %s117, 1
      %p121 = scmp.eq.s32.totalorder %s20, 1
      %p122 = scmp.ne.s32.totalorder %s117, %s119
      %p123 = scmp.eq.s32.totalorder %s20, 0
      %p124 = por %p122, %p123
      %p125 = scmp.ne.s32.totalorder %s117, %s119
      %p126 = scmp.eq.s32.totalorder %s25, 1
      %p127 = por %p125, %p126
      %p128 = scmp.ne.s32.totalorder %s119, %s120
      %p129 = scmp.eq.s32.totalorder %s25, 0
      %p130 = por %p128, %p129
      %p131 = scmp.ne.s32.totalorder %s119, %s120
      %p132 = scmp.eq.s32.totalorder %s26, 1
      %p133 = por %p131, %p132
      %p135 = scmp.ne.s32.totalorder %s120, %s134
      %p136 = scmp.eq.s32.totalorder %s26, 0
      %p137 = por %p135, %p136
      %s139 = sadd.s32 %s138, 1
      %p142 = scmp.eq.s32.totalorder %s20, 1
      %p143 = scmp.ne.s32.totalorder %s138, %s140
      %p144 = scmp.eq.s32.totalorder %s20, 0
      %p145 = por %p143, %p144
      %p146 = scmp.ne.s32.totalorder %s138, %s140
      %p147 = scmp.eq.s32.totalorder %s25, 1
      %p148 = por %p146, %p147
      %p149 = scmp.ne.s32.totalorder %s140, %s141
      %p150 = scmp.eq.s32.totalorder %s25, 0
      %p151 = por %p149, %p150
      %p152 = scmp.ne.s32.totalorder %s140, %s141
      %p153 = scmp.eq.s32.totalorder %s26, 1
      %p154 = por %p152, %p153
      %p156 = scmp.ne.s32.totalorder %s141, %s155
      %p157 = scmp.eq.s32.totalorder %s26, 0
      %p158 = por %p156, %p157
      %s160 = sadd.s32 %s159, 1
      %p163 = scmp.eq.s32.totalorder %s20, 1
      %p164 = scmp.ne.s32.totalorder %s159, %s161
      %p165 = scmp.eq.s32.totalorder %s20, 0
      %p166 = por %p164, %p165
      %p167 = scmp.ne.s32.totalorder %s159, %s161
      %p168 = scmp.eq.s32.totalorder %s25, 1
      %p169 = por %p167, %p168
      %p170 = scmp.ne.s32.totalorder %s161, %s162
      %p171 = scmp.eq.s32.totalorder %s25, 0
      %p172 = por %p170, %p171
      %p173 = scmp.ne.s32.totalorder %s161, %s162
      %p174 = scmp.eq.s32.totalorder %s26, 1
      %p175 = por %p173, %p174
      %p177 = scmp.ne.s32.totalorder %s162, %s176
      %p178 = scmp.eq.s32.totalorder %s26, 0
      %p179 = por %p177, %p178
      %s181 = sadd.s32 %s180, 1
      %p184 = scmp.eq.s32.totalorder %s20, 1
      %p185 = scmp.ne.s32.totalorder %s180, %s182
      %p186 = scmp.eq.s32.totalorder %s20, 0
      %p187 = por %p185, %p186
      %p188 = scmp.ne.s32.totalorder %s180, %s182
      %p189 = scmp.eq.s32.totalorder %s25, 1
      %p190 = por %p188, %p189
      %p191 = scmp.ne.s32.totalorder %s182, %s183
      %p192 = scmp.eq.s32.totalorder %s25, 0
      %p193 = por %p191, %p192
      %p194 = scmp.ne.s32.totalorder %s182, %s183
      %p195 = scmp.eq.s32.totalorder %s26, 1
      %p196 = por %p194, %p195
      %p198 = scmp.ne.s32.totalorder %s183, %s197
      %p199 = scmp.eq.s32.totalorder %s26, 0
      %p200 = por %p198, %p199
      %s202 = sadd.s32 %s201, 1
      %p205 = scmp.eq.s32.totalorder %s20, 1
      %p206 = scmp.ne.s32.totalorder %s201, %s203
      %p207 = scmp.eq.s32.totalorder %s20, 0
      %p208 = por %p206, %p207
      %p209 = scmp.ne.s32.totalorder %s201, %s203
      %p210 = scmp.eq.s32.totalorder %s25, 1
      %p211 = por %p209, %p210
      %p212 = scmp.ne.s32.totalorder %s203, %s204
      %p213 = scmp.eq.s32.totalorder %s25, 0
      %p214 = por %p212, %p213
      %p215 = scmp.ne.s32.totalorder %s203, %s204
      %p216 = scmp.eq.s32.totalorder %s26, 1
      %p217 = por %p215, %p216
      %p219 = scmp.ne.s32.totalorder %s204, %s218
      %p220 = scmp.eq.s32.totalorder %s26, 0
      %p221 = por %p219, %p220
      %s223 = sadd.s32 %s222, 1
      %p226 = scmp.eq.s32.totalorder %s20, 1
      %p227 = scmp.ne.s32.totalorder %s222, %s224
      %p228 = scmp.eq.s32.totalorder %s20, 0
      %p229 = por %p227, %p228
      %p230 = scmp.ne.s32.totalorder %s222, %s224
      %p231 = scmp.eq.s32.totalorder %s25, 1
      %p232 = por %p230, %p231
      %p233 = scmp.ne.s32.totalorder %s224, %s225
      %p234 = scmp.eq.s32.totalorder %s25, 0
      %p235 = por %p233, %p234
      %p236 = scmp.ne.s32.totalorder %s224, %s225
      %p237 = scmp.eq.s32.totalorder %s26, 1
      %p238 = por %p236, %p237
      %p240 = scmp.ne.s32.totalorder %s225, %s239
      %p241 = scmp.eq.s32.totalorder %s26, 0
      %p242 = por %p240, %p241
      %s244 = sadd.s32 %s243, 1
      %p247 = scmp.eq.s32.totalorder %s20, 1
      %p248 = scmp.ne.s32.totalorder %s243, %s245
      %p249 = scmp.eq.s32.totalorder %s20, 0
      %p250 = por %p248, %p249
      %p251 = scmp.ne.s32.totalorder %s243, %s245
      %p252 = scmp.eq.s32.totalorder %s25, 1
      %p253 = por %p251, %p252
      %p254 = scmp.ne.s32.totalorder %s245, %s246
      %p255 = scmp.eq.s32.totalorder %s25, 0
      %p256 = por %p254, %p255
      %p257 = scmp.ne.s32.totalorder %s245, %s246
      %p258 = scmp.eq.s32.totalorder %s26, 1
      %p259 = por %p257, %p258
      %p261 = scmp.ne.s32.totalorder %s246, %s260
      %p262 = scmp.eq.s32.totalorder %s26, 0
      %p263 = por %p261, %p262
      %s264 = ssub.s32 %s20, %s27
      %p265 = scmp.eq.s32.totalorder %s264, 0
      %s267 = sadd.s32 %s266, 1
      %s268 = scalar_select %p265, %s266, %s267
      %p271 = pneg %p265
      %p272 = scmp.eq.s32.totalorder %s20, 1
      %p273 = por %p271, %p272
      %p274 = scmp.ne.s32.totalorder %s266, %s269
      %p275 = scmp.eq.s32.totalorder %s20, 0
      %p276 = por %p274, %p275
      %p277 = scmp.ne.s32.totalorder %s266, %s269
      %p278 = scmp.eq.s32.totalorder %s25, 1
      %p279 = por %p277, %p278
      %p280 = scmp.ne.s32.totalorder %s269, %s270
      %p281 = scmp.eq.s32.totalorder %s25, 0
      %p282 = por %p280, %p281
      %p283 = scmp.ne.s32.totalorder %s269, %s270
      %p284 = scmp.eq.s32.totalorder %s26, 1
      %p285 = por %p283, %p284
      %p287 = scmp.ne.s32.totalorder %s270, %s286
      %p288 = scmp.eq.s32.totalorder %s26, 0
      %p289 = por %p287, %p288
      %p290 = scmp.le.s32.totalorder 1, %s20
      %p291 = scmp.lt.s32.totalorder %s20, 3
      %p292 = pnand %p290, %p291
      %p293 = pneg %p292
      // Predicated region
      $region9: #{image_encoder_forward.1} parent=5 // pred_check
        _
      $region10: #{image_encoder_forward.1} parent=5 // pred_check_branch
        %295 = sbr.rel (%p292) target = $region12
      $region11: #{image_encoder_forward.1} parent=5 // pred_region
        %s296 = ssub.s32 %s20, 1
        // Predicated region
        $region13: #{image_encoder_forward.1} parent=11 // pred_check
          %p297 = pneg %p67
        $region14: #{image_encoder_forward.1} parent=11 // pred_check_branch
          %299 = sbr.rel (%p297) target = $region16
        $region15: #{image_encoder_forward.1} parent=11 // pred_region
          _
        $region16: #{image_encoder_forward.1} parent=11 // pred_fallthru
          _
        // Predicated region
        $region17: #{image_encoder_forward.1} parent=11 // pred_check
          %p300 = pneg %p88
        $region18: #{image_encoder_forward.1} parent=11 // pred_check_branch
          %302 = sbr.rel (%p300) target = $region20
        $region19: #{image_encoder_forward.1} parent=11 // pred_region
          _
        $region20: #{image_encoder_forward.1} parent=11 // pred_fallthru
          _
        // Predicated region
        $region21: #{image_encoder_forward.1} parent=11 // pred_check
          %p303 = pneg %p109
        $region22: #{image_encoder_forward.1} parent=11 // pred_check_branch
          %305 = sbr.rel (%p303) target = $region24
        $region23: #{image_encoder_forward.1} parent=11 // pred_region
          _
        $region24: #{image_encoder_forward.1} parent=11 // pred_fallthru
          _
        // Predicated region
        $region25: #{image_encoder_forward.1} parent=11 // pred_check
          %p306 = pneg %p130
        $region26: #{image_encoder_forward.1} parent=11 // pred_check_branch
          %308 = sbr.rel (%p306) target = $region28
        $region27: #{image_encoder_forward.1} parent=11 // pred_region
          _
        $region28: #{image_encoder_forward.1} parent=11 // pred_fallthru
          _
        // Predicated region
        $region29: #{image_encoder_forward.1} parent=11 // pred_check
          %p309 = pneg %p151
        $region30: #{image_encoder_forward.1} parent=11 // pred_check_branch
          %311 = sbr.rel (%p309) target = $region32
        $region31: #{image_encoder_forward.1} parent=11 // pred_region
          _
        $region32: #{image_encoder_forward.1} parent=11 // pred_fallthru
          _
        // Predicated region
        $region33: #{image_encoder_forward.1} parent=11 // pred_check
          %p312 = pneg %p172
        $region34: #{image_encoder_forward.1} parent=11 // pred_check_branch
          %314 = sbr.rel (%p312) target = $region36
        $region35: #{image_encoder_forward.1} parent=11 // pred_region
          _
        $region36: #{image_encoder_forward.1} parent=11 // pred_fallthru
          _
        // Predicated region
        $region37: #{image_encoder_forward.1} parent=11 // pred_check
          %p315 = pneg %p193
        $region38: #{image_encoder_forward.1} parent=11 // pred_check_branch
          %317 = sbr.rel (%p315) target = $region40
        $region39: #{image_encoder_forward.1} parent=11 // pred_region
          _
        $region40: #{image_encoder_forward.1} parent=11 // pred_fallthru
          _
        // Predicated region
        $region41: #{image_encoder_forward.1} parent=11 // pred_check
          %p318 = pneg %p214
        $region42: #{image_encoder_forward.1} parent=11 // pred_check_branch
          %320 = sbr.rel (%p318) target = $region44
        $region43: #{image_encoder_forward.1} parent=11 // pred_region
          _
        $region44: #{image_encoder_forward.1} parent=11 // pred_fallthru
          _
        // Predicated region
        $region45: #{image_encoder_forward.1} parent=11 // pred_check
          %p321 = pneg %p235
        $region46: #{image_encoder_forward.1} parent=11 // pred_check_branch
          %323 = sbr.rel (%p321) target = $region48
        $region47: #{image_encoder_forward.1} parent=11 // pred_region
          _
        $region48: #{image_encoder_forward.1} parent=11 // pred_fallthru
          _
        // Predicated region
        $region49: #{image_encoder_forward.1} parent=11 // pred_check
          %p324 = pneg %p256
        $region50: #{image_encoder_forward.1} parent=11 // pred_check_branch
          %326 = sbr.rel (%p324) target = $region52
        $region51: #{image_encoder_forward.1} parent=11 // pred_region
          _
        $region52: #{image_encoder_forward.1} parent=11 // pred_fallthru
          _
      $region12: #{image_encoder_forward.1} parent=5 // pred_fallthru
        _
      %p327 = scmp.lt.s32.totalorder %s20, 2
      // Predicated region
      $region53: #{image_encoder_forward.1} parent=5 // pred_check
        %p328 = pneg %p327
      $region54: #{image_encoder_forward.1} parent=5 // pred_check_branch
        %330 = sbr.rel (%p328) target = $region56
      $region55: #{image_encoder_forward.1} parent=5 // pred_region
        // Predicated region
        $region57: #{image_encoder_forward.1} parent=55 // pred_check
          %p331 = pneg %p40
        $region58: #{image_encoder_forward.1} parent=55 // pred_check_branch
          %333 = sbr.rel (%p331) target = $region60
        $region59: #{image_encoder_forward.1} parent=55 // pred_region
          %s334 = smul.u32 32, %s20
          %p335 = scmp.lt.s32.totalorder %s334, 63
          %s336 = scalar_select %p335, %s334, 63
          %s337 = smul.addr %s336, 2
          %s338 = smul.addr %s337, 4
          %s339 = scalar_lea.vmem %s0, %s338
          %s340 = smul.u32 32, %s20
        $region60: #{image_encoder_forward.1} parent=55 // pred_fallthru
          _
      $region56: #{image_encoder_forward.1} parent=5 // pred_fallthru
        _
      %p341 = scmp.le.s32.totalorder 1, %s20
      %p342 = scmp.lt.s32.totalorder %s20, 3
      %p343 = pnand %p341, %p342
      %p344 = pneg %p343
      // Predicated region
      $region61: #{image_encoder_forward.1} parent=5 // pred_check
        _
      $region62: #{image_encoder_forward.1} parent=5 // pred_check_branch
        %346 = sbr.rel (%p343) target = $region64
      $region63: #{image_encoder_forward.1} parent=5 // pred_region
        %s347 = ssub.s32 %s20, 1
        %s348 = smul.u32 32, %s25
        %p349 = scmp.lt.s32.totalorder %s348, 63
        %s350 = scalar_select %p349, %s348, 63
        %s351 = smul.addr %s350, 2
        %s352 = smul.addr %s351, 4
        %s353 = scalar_lea.vmem %s0, %s352
        %p354 = pneg %p46
        %p355 = pneg %p43
        %p356 = pneg %p67
        %p357 = pneg %p64
        %p358 = pneg %p88
        %p359 = pneg %p85
        %p360 = pneg %p109
        %p361 = pneg %p106
        %p362 = pneg %p130
        %p363 = pneg %p127
        %p364 = pneg %p151
        %p365 = pneg %p148
        %p366 = pneg %p172
        %p367 = pneg %p169
        %p368 = pneg %p193
        %p369 = pneg %p190
        %p370 = pneg %p214
        %p371 = pneg %p211
        %p372 = pneg %p235
        %p373 = pneg %p232
        %p374 = pneg %p256
        %p375 = pneg %p253
        %p376 = pneg %p282
        %p377 = pneg %p279
        %s378 = sand.u32 %s269, 1
        %s379 = scalar_lea.sflag [#allocation3], %s378
        %s380 = sand.u32 %s269, 1
        %s381 = scalar_lea.vmem [#allocation2], %s380
        %s382 = smul.u32 32, %s25
        %p383 = scmp.lt.s32.totalorder %s382, 63
        %s384 = scalar_select %p383, %s382, 63
        %s385 = smul.addr %s384, 2
        %s386 = smul.addr %s385, 4
        %s387 = scalar_lea.vmem %s0, %s386
        %s388 = smul.u32 32, %s25
        %v390 = vld [vmem:[%s387] sm:$0xff]
        %v391 = vld [vmem:[%s387 + $0x8] sm:$0xff]
        %v392 = vld [vmem:[%s387 + $0x10] sm:$0xff]
        %v393 = vld [vmem:[%s387 + $0x18] sm:$0xff]
        %v394 = vld [vmem:[%s387 + $0x20] sm:$0xff]
        %v395 = vld [vmem:[%s387 + $0x28] sm:$0xff]
        %v396 = vld [vmem:[%s387 + $0x30] sm:$0xff]
        %v397 = vld [vmem:[%s387 + $0x38] sm:$0xff]
        %v398 = vld [vmem:[%s387 + $0x40] sm:$0xff]
        %v399 = vld [vmem:[%s387 + $0x48] sm:$0xff]
        %v400 = vld [vmem:[%s387 + $0x50] sm:$0xff]
        %v401 = vld [vmem:[%s387 + $0x58] sm:$0xff]
        %v402 = vld [vmem:[%s387 + $0x60] sm:$0xff]
        %v403 = vld [vmem:[%s387 + $0x68] sm:$0xff]
        %v404 = vld [vmem:[%s387 + $0x70] sm:$0xff]
        %v405 = vld [vmem:[%s387 + $0x78] sm:$0xff]
        %v406 = vld [vmem:[%s387 + $0x80] sm:$0xff]
        %v407 = vld [vmem:[%s387 + $0x88] sm:$0xff]
        %v408 = vld [vmem:[%s387 + $0x90] sm:$0xff]
        %v409 = vld [vmem:[%s387 + $0x98] sm:$0xff]
        %v410 = vld [vmem:[%s387 + $0xa0] sm:$0xff]
        %v411 = vld [vmem:[%s387 + $0xa8] sm:$0xff]
        %v412 = vld [vmem:[%s387 + $0xb0] sm:$0xff]
        %v413 = vld [vmem:[%s387 + $0xb8] sm:$0xff]
        %v414 = vld [vmem:[%s387 + $0xc0] sm:$0xff]
        %v415 = vld [vmem:[%s387 + $0xc8] sm:$0xff]
        %v416 = vld [vmem:[%s387 + $0xd0] sm:$0xff]
        %v417 = vld [vmem:[%s387 + $0xd8] sm:$0xff]
        %v418 = vld [vmem:[%s387 + $0xe0] sm:$0xff]
        %v419 = vld [vmem:[%s387 + $0xe8] sm:$0xff]
        %v420 = vld [vmem:[%s387 + $0xf0] sm:$0xff]
        %v421 = vld [vmem:[%s387 + $0xf8] sm:$0xff]
        %v422 = vld [vmem:[%s1] sm:$0xf]
        %v423 = vld [vmem:[%s1 + $0x4] sm:$0xf]
        %v424 = vld [vmem:[%s1 + $0x8] sm:$0xf]
        %v425 = vld [vmem:[%s1 + $0xc] sm:$0xf]
        %v426 = vld [vmem:[%s1 + $0x10] sm:$0xf]
        %v427 = vld [vmem:[%s1 + $0x14] sm:$0xf]
        %v428 = vld [vmem:[%s1 + $0x18] sm:$0xf]
        %v429 = vld [vmem:[%s1 + $0x1c] sm:$0xf]
        %v430 = vld [vmem:[%s1 + $0x20] sm:$0xf]
        %v431 = vld [vmem:[%s1 + $0x24] sm:$0xf]
        %v432 = vld [vmem:[%s1 + $0x28] sm:$0xf]
        %v433 = vld [vmem:[%s1 + $0x2c] sm:$0xf]
        %v434 = vld [vmem:[%s1 + $0x30] sm:$0xf]
        %v435 = vld [vmem:[%s1 + $0x34] sm:$0xf]
        %v436 = vld [vmem:[%s1 + $0x38] sm:$0xf]
        %v437 = vld [vmem:[%s1 + $0x3c] sm:$0xf]
        %v438 = vld [vmem:[%s1 + $0x40] sm:$0xf]
        %v439 = vld [vmem:[%s1 + $0x44] sm:$0xf]
        %v440 = vld [vmem:[%s1 + $0x48] sm:$0x3]
        %v441 = vld [vmem:[%s2] sm:$0x1]
        %v443 = vlaneseq
        %v444 = vshrl.u32 %v443, 7
        %v445 = vsub.s32 0, %v444
        %v446 = vrot.slane %v441, %v445
        %v480 = vunpack.c.l.b16 %v390
        %v481 = vunpack.c.h.b16 %v390
        %v482 = vunpack.c.l.b16 %v391
        %v483 = vunpack.c.h.b16 %v391
        %v484 = vunpack.c.l.b16 %v392
        %v485 = vunpack.c.h.b16 %v392
        %v486 = vunpack.c.l.b16 %v393
        %v487 = vunpack.c.h.b16 %v393
        %v488 = vunpack.c.l.b16 %v394
        %v489 = vunpack.c.h.b16 %v394
        %v490 = vunpack.c.l.b16 %v395
        %v491 = vunpack.c.h.b16 %v395
        %v492 = vunpack.c.l.b16 %v396
        %v493 = vunpack.c.h.b16 %v396
        %v494 = vunpack.c.l.b16 %v397
        %v495 = vunpack.c.h.b16 %v397
        %v496 = vunpack.c.l.b16 %v398
        %v497 = vunpack.c.h.b16 %v398
        %v498 = vunpack.c.l.b16 %v399
        %v499 = vunpack.c.h.b16 %v399
        %v500 = vunpack.c.l.b16 %v400
        %v501 = vunpack.c.h.b16 %v400
        %v502 = vunpack.c.l.b16 %v401
        %v503 = vunpack.c.h.b16 %v401
        %v504 = vunpack.c.l.b16 %v402
        %v505 = vunpack.c.h.b16 %v402
        %v506 = vunpack.c.l.b16 %v403
        %v507 = vunpack.c.h.b16 %v403
        %v508 = vunpack.c.l.b16 %v404
        %v509 = vunpack.c.h.b16 %v404
        %v510 = vunpack.c.l.b16 %v405
        %v511 = vunpack.c.h.b16 %v405
        %v512 = vunpack.c.l.b16 %v406
        %v513 = vunpack.c.h.b16 %v406
        %v514 = vunpack.c.l.b16 %v407
        %v515 = vunpack.c.h.b16 %v407
        %v516 = vunpack.c.l.b16 %v408
        %v517 = vunpack.c.h.b16 %v408
        %v518 = vunpack.c.l.b16 %v409
        %v519 = vunpack.c.h.b16 %v409
        %v520 = vunpack.c.l.b16 %v410
        %v521 = vunpack.c.h.b16 %v410
        %v522 = vunpack.c.l.b16 %v411
        %v523 = vunpack.c.h.b16 %v411
        %v524 = vunpack.c.l.b16 %v412
        %v525 = vunpack.c.h.b16 %v412
        %v526 = vunpack.c.l.b16 %v413
        %v527 = vunpack.c.h.b16 %v413
        %v528 = vunpack.c.l.b16 %v414
        %v529 = vunpack.c.h.b16 %v414
        %v530 = vunpack.c.l.b16 %v415
        %v531 = vunpack.c.h.b16 %v415
        %v532 = vunpack.c.l.b16 %v416
        %v533 = vunpack.c.h.b16 %v416
        %v534 = vunpack.c.l.b16 %v417
        %v535 = vunpack.c.h.b16 %v417
        %v536 = vunpack.c.l.b16 %v418
        %v537 = vunpack.c.h.b16 %v418
        %v538 = vunpack.c.l.b16 %v419
        %v539 = vunpack.c.h.b16 %v419
        %v540 = vunpack.c.l.b16 %v420
        %v541 = vunpack.c.h.b16 %v420
        %v542 = vunpack.c.l.b16 %v421
        %v543 = vunpack.c.h.b16 %v421
        %v544 = vpack.c.b16 %v482, %v480
        %v545 = vpack.c.b16 %v483, %v481
        %v546 = vpack.c.b16 %v486, %v484
        %v547 = vpack.c.b16 %v487, %v485
        %v548 = vpack.c.b16 %v490, %v488
        %v549 = vpack.c.b16 %v491, %v489
        %v550 = vpack.c.b16 %v494, %v492
        %v551 = vpack.c.b16 %v495, %v493
        %v552 = vpack.c.b16 %v498, %v496
        %v553 = vpack.c.b16 %v499, %v497
        %v554 = vpack.c.b16 %v502, %v500
        %v555 = vpack.c.b16 %v503, %v501
        %v556 = vpack.c.b16 %v506, %v504
        %v557 = vpack.c.b16 %v507, %v505
        %v558 = vpack.c.b16 %v510, %v508
        %v559 = vpack.c.b16 %v511, %v509
        %v560 = vpack.c.b16 %v514, %v512
        %v561 = vpack.c.b16 %v515, %v513
        %v562 = vpack.c.b16 %v518, %v516
        %v563 = vpack.c.b16 %v519, %v517
        %v564 = vpack.c.b16 %v522, %v520
        %v565 = vpack.c.b16 %v523, %v521
        %v566 = vpack.c.b16 %v526, %v524
        %v567 = vpack.c.b16 %v527, %v525
        %v568 = vpack.c.b16 %v530, %v528
        %v569 = vpack.c.b16 %v531, %v529
        %v570 = vpack.c.b16 %v534, %v532
        %v571 = vpack.c.b16 %v535, %v533
        %v572 = vpack.c.b16 %v538, %v536
        %v573 = vpack.c.b16 %v539, %v537
        %v574 = vpack.c.b16 %v542, %v540
        %v575 = vpack.c.b16 %v543, %v541
        %v611 = vunpack.c.l.b16 %v422
        %v612 = vunpack.c.l.b16 %v423
        %v613 = vunpack.c.l.b16 %v424
        %v614 = vunpack.c.l.b16 %v425
        %v615 = vunpack.c.l.b16 %v426
        %v616 = vunpack.c.l.b16 %v427
        %v617 = vunpack.c.l.b16 %v428
        %v618 = vunpack.c.l.b16 %v429
        %v619 = vunpack.c.l.b16 %v430
        %v620 = vunpack.c.l.b16 %v431
        %v621 = vunpack.c.l.b16 %v432
        %v622 = vunpack.c.l.b16 %v433
        %v623 = vunpack.c.l.b16 %v434
        %v624 = vunpack.c.l.b16 %v435
        %v625 = vunpack.c.l.b16 %v436
        %v626 = vunpack.c.l.b16 %v437
        %v627 = vunpack.c.l.b16 %v438
        %v628 = vunpack.c.l.b16 %v439
        %v629 = vunpack.c.l.b16 %v440
        %v630 = vpack.c.b16 %v612, %v611
        %v631 = vpack.c.b16 %v614, %v613
        %v632 = vpack.c.b16 %v616, %v615
        %v633 = vpack.c.b16 %v618, %v617
        %v634 = vpack.c.b16 %v620, %v619
        %v635 = vpack.c.b16 %v622, %v621
        %v636 = vpack.c.b16 %v624, %v623
        %v637 = vpack.c.b16 %v626, %v625
        %v638 = vpack.c.b16 %v628, %v627
        %v639 = vpack.c.b16 %v629, %v629
        %vm649 = vcmask 154624
        %v651 = vsel %vm649, %v545, 0
        %v654 = vsel %vm649, %v547, 0
        %v657 = vsel %vm649, %v549, 0
        %v660 = vsel %vm649, %v551, 0
        %v663 = vsel %vm649, %v553, 0
        %v666 = vsel %vm649, %v555, 0
        %v669 = vsel %vm649, %v557, 0
        %v672 = vsel %vm649, %v559, 0
        %v675 = vsel %vm649, %v561, 0
        %v678 = vsel %vm649, %v563, 0
        %v681 = vsel %vm649, %v565, 0
        %v684 = vsel %vm649, %v567, 0
        %v687 = vsel %vm649, %v569, 0
        %v690 = vsel %vm649, %v571, 0
        %v693 = vsel %vm649, %v573, 0
        %v696 = vsel %vm649, %v575, 0
        %vm698 = vcmask 1040384
        %vm699 = vcmask 1041408
        %v700 = vsel %vm698, 4294967295, 65535
        %v701 = vsel %vm699, %v700, 0
        %v703 = vand.u32 %v639, %v701
        %705 = vmatprep.subr.bf16.mxu0 0
        %706 = vmatpush1.bf16.msra.mxu0 %v630
        %707 = vmatprep.subr.bf16.mxu0 0
        %708 = vmatpush1.bf16.msra.mxu0 %v631
        %709 = vmatprep.subr.bf16.mxu0 0
        %710 = vmatpush1.bf16.msra.mxu0 %v632
        %711 = vmatprep.subr.bf16.mxu0 0
        %712 = vmatpush1.bf16.msra.mxu0 %v633
        %713 = vmatprep.subr.bf16.mxu0 0
        %714 = vmatpush1.bf16.msra.mxu0 %v634
        %715 = vmatprep.subr.bf16.mxu0 0
        %716 = vmatpush1.bf16.msra.mxu0 %v635
        %717 = vmatprep.subr.bf16.mxu0 0
        %718 = vmatpush1.bf16.msra.mxu0 %v636
        %719 = vmatprep.subr.bf16.mxu0 0
        %720 = vmatpush1.bf16.msra.mxu0 %v637
        %721 = vmatprep.subr.bf16.mxu0 0
        %722 = vmatpush1.bf16.msra.mxu0 %v638
        %723 = vmatprep.subr.bf16.mxu0 0
        %724 = vmatpush1.bf16.msra.mxu0 %v703
        %725 = vmatprep.subr.bf16.mxu0 0
        %726 = vmatpush1.bf16.msra.mxu0 0
        %727 = vmatprep.subr.bf16.mxu0 0
        %728 = vmatpush1.bf16.msra.mxu0 0
        %729 = vmatprep.subr.bf16.mxu0 0
        %730 = vmatpush1.bf16.msra.mxu0 0
        %731 = vmatprep.subr.bf16.mxu0 0
        %732 = vmatpush1.bf16.msra.mxu0 0
        %733 = vmatprep.subr.bf16.mxu0 0
        %734 = vmatpush1.bf16.msra.mxu0 0
        %735 = vmatprep.subr.bf16.mxu0 0
        %736 = vmatpush1.bf16.msra.mxu0 0
        %737 = vmatprep.mubr.bf16.mxu0 %v651
        %738 = vmatmul.mubr.bf16.gmra.mrb[0].mxu0 %v544
        %v739 = vpop.f32.mrb[0].mxu0
        %v740 = vadd.f32 %v446, %v739
        %v741 = vpop.f32.mrb[0].mxu0
        %v742 = vpop.f32.mrb[0].mxu0
        %v743 = vadd.f32 %v446, %v742
        %v744 = vpop.f32.mrb[0].mxu0
        %745 = vmatprep.mubr.bf16.mxu0 %v654
        %746 = vmatmul.mubr.bf16.gmra.mrb[0].mxu0 %v546
        %v747 = vpop.f32.mrb[0].mxu0
        %v748 = vadd.f32 %v446, %v747
        %v749 = vpop.f32.mrb[0].mxu0
        %v750 = vpop.f32.mrb[0].mxu0
        %v751 = vadd.f32 %v446, %v750
        %v752 = vpop.f32.mrb[0].mxu0
        %753 = vmatprep.mubr.bf16.mxu0 %v657
        %754 = vmatmul.mubr.bf16.gmra.mrb[0].mxu0 %v548
        %v755 = vpop.f32.mrb[0].mxu0
        %v756 = vadd.f32 %v446, %v755
        %v757 = vpop.f32.mrb[0].mxu0
        %v758 = vpop.f32.mrb[0].mxu0
        %v759 = vadd.f32 %v446, %v758
        %v760 = vpop.f32.mrb[0].mxu0
        %761 = vmatprep.mubr.bf16.mxu0 %v660
        %762 = vmatmul.mubr.bf16.gmra.mrb[0].mxu0 %v550
        %v763 = vpop.f32.mrb[0].mxu0
        %v764 = vadd.f32 %v446, %v763
        %v765 = vpop.f32.mrb[0].mxu0
        %v766 = vpop.f32.mrb[0].mxu0
        %v767 = vadd.f32 %v446, %v766
        %v768 = vpop.f32.mrb[0].mxu0
        %769 = vmatprep.mubr.bf16.mxu0 %v663
        %770 = vmatmul.mubr.bf16.gmra.mrb[0].mxu0 %v552
        %v771 = vpop.f32.mrb[0].mxu0
        %v772 = vadd.f32 %v446, %v771
        %v773 = vpop.f32.mrb[0].mxu0
        %v774 = vpop.f32.mrb[0].mxu0
        %v775 = vadd.f32 %v446, %v774
        %v776 = vpop.f32.mrb[0].mxu0
        %777 = vmatprep.mubr.bf16.mxu0 %v666
        %778 = vmatmul.mubr.bf16.gmra.mrb[0].mxu0 %v554
        %v779 = vpop.f32.mrb[0].mxu0
        %v780 = vadd.f32 %v446, %v779
        %v781 = vpop.f32.mrb[0].mxu0
        %v782 = vpop.f32.mrb[0].mxu0
        %v783 = vadd.f32 %v446, %v782
        %v784 = vpop.f32.mrb[0].mxu0
        %785 = vmatprep.mubr.bf16.mxu0 %v669
        %786 = vmatmul.mubr.bf16.gmra.mrb[0].mxu0 %v556
        %v787 = vpop.f32.mrb[0].mxu0
        %v788 = vadd.f32 %v446, %v787
        %v789 = vpop.f32.mrb[0].mxu0
        %v790 = vpop.f32.mrb[0].mxu0
        %v791 = vadd.f32 %v446, %v790
        %v792 = vpop.f32.mrb[0].mxu0
        %793 = vmatprep.mubr.bf16.mxu0 %v672
        %794 = vmatmul.mubr.bf16.gmra.mrb[0].mxu0 %v558
        %v795 = vpop.f32.mrb[0].mxu0
        %v796 = vadd.f32 %v446, %v795
        %v797 = vpop.f32.mrb[0].mxu0
        %v798 = vpop.f32.mrb[0].mxu0
        %v799 = vadd.f32 %v446, %v798
        %v800 = vpop.f32.mrb[0].mxu0
        %801 = vmatprep.mubr.bf16.mxu0 %v675
        %802 = vmatmul.mubr.bf16.gmra.mrb[0].mxu0 %v560
        %v803 = vpop.f32.mrb[0].mxu0
        %v804 = vadd.f32 %v446, %v803
        %v805 = vpop.f32.mrb[0].mxu0
        %v806 = vpop.f32.mrb[0].mxu0
        %v807 = vadd.f32 %v446, %v806
        %v808 = vpop.f32.mrb[0].mxu0
        %809 = vmatprep.mubr.bf16.mxu0 %v678
        %810 = vmatmul.mubr.bf16.gmra.mrb[0].mxu0 %v562
        %v811 = vpop.f32.mrb[0].mxu0
        %v812 = vadd.f32 %v446, %v811
        %v813 = vpop.f32.mrb[0].mxu0
        %v814 = vpop.f32.mrb[0].mxu0
        %v815 = vadd.f32 %v446, %v814
        %v816 = vpop.f32.mrb[0].mxu0
        %817 = vmatprep.mubr.bf16.mxu0 %v681
        %818 = vmatmul.mubr.bf16.gmra.mrb[0].mxu0 %v564
        %v819 = vpop.f32.mrb[0].mxu0
        %v820 = vadd.f32 %v446, %v819
        %v821 = vpop.f32.mrb[0].mxu0
        %v822 = vpop.f32.mrb[0].mxu0
        %v823 = vadd.f32 %v446, %v822
        %v824 = vpop.f32.mrb[0].mxu0
        %825 = vmatprep.mubr.bf16.mxu0 %v684
        %826 = vmatmul.mubr.bf16.gmra.mrb[0].mxu0 %v566
        %v827 = vpop.f32.mrb[0].mxu0
        %v828 = vadd.f32 %v446, %v827
        %v829 = vpop.f32.mrb[0].mxu0
        %v830 = vpop.f32.mrb[0].mxu0
        %v831 = vadd.f32 %v446, %v830
        %v832 = vpop.f32.mrb[0].mxu0
        %833 = vmatprep.mubr.bf16.mxu0 %v687
        %834 = vmatmul.mubr.bf16.gmra.mrb[0].mxu0 %v568
        %v835 = vpop.f32.mrb[0].mxu0
        %v836 = vadd.f32 %v446, %v835
        %v837 = vpop.f32.mrb[0].mxu0
        %v838 = vpop.f32.mrb[0].mxu0
        %v839 = vadd.f32 %v446, %v838
        %v840 = vpop.f32.mrb[0].mxu0
        %841 = vmatprep.mubr.bf16.mxu0 %v690
        %842 = vmatmul.mubr.bf16.gmra.mrb[0].mxu0 %v570
        %v843 = vpop.f32.mrb[0].mxu0
        %v844 = vadd.f32 %v446, %v843
        %v845 = vpop.f32.mrb[0].mxu0
        %v846 = vpop.f32.mrb[0].mxu0
        %v847 = vadd.f32 %v446, %v846
        %v848 = vpop.f32.mrb[0].mxu0
        %849 = vmatprep.mubr.bf16.mxu0 %v693
        %850 = vmatmul.mubr.bf16.gmra.mrb[0].mxu0 %v572
        %v851 = vpop.f32.mrb[0].mxu0
        %v852 = vadd.f32 %v446, %v851
        %v853 = vpop.f32.mrb[0].mxu0
        %v854 = vpop.f32.mrb[0].mxu0
        %v855 = vadd.f32 %v446, %v854
        %v856 = vpop.f32.mrb[0].mxu0
        %857 = vmatprep.mubr.bf16.mxu0 %v696
        %858 = vmatmul.mubr.bf16.gmra.mrb[0].mxu0 %v574
        %v859 = vpop.f32.mrb[0].mxu0
        %v860 = vadd.f32 %v446, %v859
        %v861 = vpop.f32.mrb[0].mxu0
        %v862 = vpop.f32.mrb[0].mxu0
        %v863 = vadd.f32 %v446, %v862
        %v864 = vpop.f32.mrb[0].mxu0
        %865 = vdwg.mxu0
        %v866 = vmax.f32 %v740, 0.0
        %v867 = vmax.f32 %v743, 0.0
        %v868 = vmax.f32 %v748, 0.0
        %v869 = vmax.f32 %v751, 0.0
        %v870 = vmax.f32 %v756, 0.0
        %v871 = vmax.f32 %v759, 0.0
        %v872 = vmax.f32 %v764, 0.0
        %v873 = vmax.f32 %v767, 0.0
        %v874 = vmax.f32 %v772, 0.0
        %v875 = vmax.f32 %v775, 0.0
        %v876 = vmax.f32 %v780, 0.0
        %v877 = vmax.f32 %v783, 0.0
        %v878 = vmax.f32 %v788, 0.0
        %v879 = vmax.f32 %v791, 0.0
        %v880 = vmax.f32 %v796, 0.0
        %v881 = vmax.f32 %v799, 0.0
        %v882 = vmax.f32 %v804, 0.0
        %v883 = vmax.f32 %v807, 0.0
        %v884 = vmax.f32 %v812, 0.0
        %v885 = vmax.f32 %v815, 0.0
        %v886 = vmax.f32 %v820, 0.0
        %v887 = vmax.f32 %v823, 0.0
        %v888 = vmax.f32 %v828, 0.0
        %v889 = vmax.f32 %v831, 0.0
        %v890 = vmax.f32 %v836, 0.0
        %v891 = vmax.f32 %v839, 0.0
        %v892 = vmax.f32 %v844, 0.0
        %v893 = vmax.f32 %v847, 0.0
        %v894 = vmax.f32 %v852, 0.0
        %v895 = vmax.f32 %v855, 0.0
        %v896 = vmax.f32 %v860, 0.0
        %v897 = vmax.f32 %v863, 0.0
        %v914 = vrot.slane %v874, 7
        %v915 = vrot.slane %v875, 7
        %v916 = vrot.slane %v876, 7
        %v917 = vrot.slane %v877, 7
        %v918 = vrot.slane %v878, 7
        %v919 = vrot.slane %v879, 7
        %v920 = vrot.slane %v880, 7
        %v921 = vrot.slane %v881, 7
        %v922 = vrot.slane %v890, 7
        %v923 = vrot.slane %v891, 7
        %v924 = vrot.slane %v892, 7
        %v925 = vrot.slane %v893, 7
        %v926 = vrot.slane %v894, 7
        %v927 = vrot.slane %v895, 7
        %v928 = vrot.slane %v896, 7
        %v929 = vrot.slane %v897, 7
        %v946 = vsel %vm698, 0.0, %v914
        %v947 = vsel %vm698, 0.0, %v915
        %v948 = vsel %vm698, 0.0, %v916
        %v949 = vsel %vm698, 0.0, %v917
        %v950 = vsel %vm698, 0.0, %v918
        %v951 = vsel %vm698, 0.0, %v919
        %v952 = vsel %vm698, 0.0, %v920
        %v953 = vsel %vm698, 0.0, %v921
        %v954 = vsel %vm698, 0.0, %v922
        %v955 = vsel %vm698, 0.0, %v923
        %v956 = vsel %vm698, 0.0, %v924
        %v957 = vsel %vm698, 0.0, %v925
        %v958 = vsel %vm698, 0.0, %v926
        %v959 = vsel %vm698, 0.0, %v927
        %v960 = vsel %vm698, 0.0, %v928
        %v961 = vsel %vm698, 0.0, %v929
        %v962 = vmax.f32 %v866, %v874
        %v963 = vmax.f32 %v867, %v875
        %v964 = vmax.f32 %v868, %v876
        %v965 = vmax.f32 %v869, %v877
        %v966 = vmax.f32 %v870, %v878
        %v967 = vmax.f32 %v871, %v879
        %v968 = vmax.f32 %v872, %v880
        %v969 = vmax.f32 %v873, %v881
        %v970 = vmax.f32 %v882, %v890
        %v971 = vmax.f32 %v883, %v891
        %v972 = vmax.f32 %v884, %v892
        %v973 = vmax.f32 %v885, %v893
        %v974 = vmax.f32 %v886, %v894
        %v975 = vmax.f32 %v887, %v895
        %v976 = vmax.f32 %v888, %v896
        %v977 = vmax.f32 %v889, %v897
        %v978 = vmax.f32 %v962, %v946
        %v979 = vmax.f32 %v963, %v947
        %v980 = vmax.f32 %v964, %v948
        %v981 = vmax.f32 %v965, %v949
        %v982 = vmax.f32 %v966, %v950
        %v983 = vmax.f32 %v967, %v951
        %v984 = vmax.f32 %v968, %v952
        %v985 = vmax.f32 %v969, %v953
        %v986 = vmax.f32 %v970, %v954
        %v987 = vmax.f32 %v971, %v955
        %v988 = vmax.f32 %v972, %v956
        %v989 = vmax.f32 %v973, %v957
        %v990 = vmax.f32 %v974, %v958
        %v991 = vmax.f32 %v975, %v959
        %v992 = vmax.f32 %v976, %v960
        %v993 = vmax.f32 %v977, %v961
        %v994 = vmax.f32 %v978, %v986
        %v995 = vmax.f32 %v979, %v987
        %v996 = vmax.f32 %v980, %v988
        %v997 = vmax.f32 %v981, %v989
        %v998 = vmax.f32 %v982, %v990
        %v999 = vmax.f32 %v983, %v991
        %v1000 = vmax.f32 %v984, %v992
        %v1001 = vmax.f32 %v985, %v993
        %v1002 = vmax.f32 %v994, 0.0
        %v1003 = vmax.f32 %v995, %v986
        %v1004 = vmax.f32 %v996, %v987
        %v1005 = vmax.f32 %v997, %v988
        %v1006 = vmax.f32 %v998, %v989
        %v1007 = vmax.f32 %v999, %v990
        %v1008 = vmax.f32 %v1000, %v991
        %v1009 = vmax.f32 %v1001, %v992
        %v1010 = vpack.c.bf16 %v1003, %v1002
        %v1011 = vpack.c.bf16 %v1005, %v1004
        %v1012 = vpack.c.bf16 %v1007, %v1006
        %v1013 = vpack.c.bf16 %v1009, %v1008
        %v1014 = vld [vmem:[%s3] sm:$0xf]
        %v1015 = vld [vmem:[%s3 + $0x4] sm:$0xf]
        %v1016 = vld [vmem:[%s3 + $0x8] sm:$0xf]
        %v1017 = vld [vmem:[%s3 + $0xc] sm:$0xf]
        %v1018 = vld [vmem:[%s4] sm:$0x1]
        %v1020 = vlaneseq
        %v1021 = vshrl.u32 %v1020, 7
        %v1022 = vsub.s32 0, %v1021
        %v1023 = vrot.slane %v1018, %v1022
        %v1029 = vunpack.c.l.b16 %v1014
        %v1030 = vunpack.c.l.b16 %v1015
        %v1031 = vunpack.c.l.b16 %v1016
        %v1032 = vunpack.c.l.b16 %v1017
        %v1033 = vpack.c.b16 %v1030, %v1029
        %v1034 = vpack.c.b16 %v1032, %v1031
        %vm1037 = vcmask 261120
        %v1039 = vsel %vm1037, %v1010, 0
        %v1042 = vsel %vm1037, %v1011, 0
        %v1045 = vsel %vm1037, %v1012, 0
        %v1048 = vsel %vm1037, %v1013, 0
        %1050 = vmatprep.subr.bf16.mxu0 0
        %1051 = vmatpush1.bf16.msra.mxu0 %v1033
        %1052 = vmatprep.subr.bf16.mxu0 0
        %1053 = vmatpush1.bf16.msra.mxu0 %v1034
        %1054 = vmatprep.subr.bf16.mxu0 0
        %1055 = vmatpush1.bf16.msra.mxu0 0
        %1056 = vmatprep.subr.bf16.mxu0 0
        %1057 = vmatpush1.bf16.msra.mxu0 0
        %1058 = vmatprep.subr.bf16.mxu0 0
        %1059 = vmatpush1.bf16.msra.mxu0 0
        %1060 = vmatprep.subr.bf16.mxu0 0
        %1061 = vmatpush1.bf16.msra.mxu0 0
        %1062 = vmatprep.subr.bf16.mxu0 0
        %1063 = vmatpush1.bf16.msra.mxu0 0
        %1064 = vmatprep.subr.bf16.mxu0 0
        %1065 = vmatpush1.bf16.msra.mxu0 0
        %1066 = vmatprep.subr.bf16.mxu0 0
        %1067 = vmatpush1.bf16.msra.mxu0 0
        %1068 = vmatprep.subr.bf16.mxu0 0
        %1069 = vmatpush1.bf16.msra.mxu0 0
        %1070 = vmatprep.subr.bf16.mxu0 0
        %1071 = vmatpush1.bf16.msra.mxu0 0
        %1072 = vmatprep.subr.bf16.mxu0 0
        %1073 = vmatpush1.bf16.msra.mxu0 0
        %1074 = vmatprep.subr.bf16.mxu0 0
        %1075 = vmatpush1.bf16.msra.mxu0 0
        %1076 = vmatprep.subr.bf16.mxu0 0
        %1077 = vmatpush1.bf16.msra.mxu0 0
        %1078 = vmatprep.subr.bf16.mxu0 0
        %1079 = vmatpush1.bf16.msra.mxu0 0
        %1080 = vmatprep.subr.bf16.mxu0 0
        %1081 = vmatpush1.bf16.msra.mxu0 0
        %1082 = vmatprep.mubr.bf16.mxu0 0
        %1083 = vmatmul.mubr.bf16.gmra.mrb[0].mxu0 %v1039
        %v1084 = vpop.f32.mrb[0].mxu0
        %v1085 = vadd.f32 %v1023, %v1084
        %v1086 = vpop.f32.mrb[0].mxu0
        %v1087 = vpop.f32.mrb[0].mxu0
        %v1088 = vadd.f32 %v1023, %v1087
        %v1089 = vpop.f32.mrb[0].mxu0
        %1090 = vmatprep.mubr.bf16.mxu0 0
        %1091 = vmatmul.mubr.bf16.gmra.mrb[0].mxu0 %v1042
        %v1092 = vpop.f32.mrb[0].mxu0
        %v1093 = vadd.f32 %v1023, %v1092
        %v1094 = vpop.f32.mrb[0].mxu0
        %v1095 = vpop.f32.mrb[0].mxu0
        %v1096 = vadd.f32 %v1023, %v1095
        %v1097 = vpop.f32.mrb[0].mxu0
        %1098 = vmatprep.mubr.bf16.mxu0 0
        %1099 = vmatmul.mubr.bf16.gmra.mrb[0].mxu0 %v1045
        %v1100 = vpop.f32.mrb[0].mxu0
        %v1101 = vadd.f32 %v1023, %v1100
        %v1102 = vpop.f32.mrb[0].mxu0
        %v1103 = vpop.f32.mrb[0].mxu0
        %v1104 = vadd.f32 %v1023, %v1103
        %v1105 = vpop.f32.mrb[0].mxu0
        %1106 = vmatprep.mubr.bf16.mxu0 0
        %1107 = vmatmul.mubr.bf16.gmra.mrb[0].mxu0 %v1048
        %v1108 = vpop.f32.mrb[0].mxu0
        %v1109 = vadd.f32 %v1023, %v1108
        %v1110 = vpop.f32.mrb[0].mxu0
        %v1111 = vpop.f32.mrb[0].mxu0
        %v1112 = vadd.f32 %v1023, %v1111
        %v1113 = vpop.f32.mrb[0].mxu0
        %1114 = vdwg.mxu0
        %v1115 = vmax.f32 %v1085, 0.0
        %v1116 = vmax.f32 %v1088, 0.0
        %v1117 = vmax.f32 %v1093, 0.0
        %v1118 = vmax.f32 %v1096, 0.0
        %v1119 = vmax.f32 %v1101, 0.0
        %v1120 = vmax.f32 %v1104, 0.0
        %v1121 = vmax.f32 %v1109, 0.0
        %v1122 = vmax.f32 %v1112, 0.0
        %v1123 = vld [vmem:[%s9] sm:$0xf]
        %v1124 = vld [vmem:[%s9 + $0x4] sm:$0xf]
        %v1125 = vld [vmem:[%s9 + $0x8] sm:$0xf]
        %v1126 = vld [vmem:[%s9 + $0xc] sm:$0xf]
        %v1127 = vld [vmem:[%s10] sm:$0x1]
        %v1129 = vlaneseq
        %v1130 = vshrl.u32 %v1129, 7
        %v1131 = vsub.s32 0, %v1130
        %v1132 = vrot.slane %v1127, %v1131
        %v1138 = vunpack.c.l.b16 %v1123
        %v1139 = vunpack.c.l.b16 %v1124
        %v1140 = vunpack.c.l.b16 %v1125
        %v1141 = vunpack.c.l.b16 %v1126
        %v1142 = vpack.c.b16 %v1139, %v1138
        %v1143 = vpack.c.b16 %v1141, %v1140
        %1146 = vmatprep.subr.bf16.mxu0 0
        %1147 = vmatpush1.bf16.msra.mxu0 %v1142
        %1148 = vmatprep.subr.bf16.mxu0 0
        %1149 = vmatpush1.bf16.msra.mxu0 %v1143
        %1150 = vmatprep.subr.bf16.mxu0 0
        %1151 = vmatpush1.bf16.msra.mxu0 0
        %1152 = vmatprep.subr.bf16.mxu0 0
        %1153 = vmatpush1.bf16.msra.mxu0 0
        %1154 = vmatprep.subr.bf16.mxu0 0
        %1155 = vmatpush1.bf16.msra.mxu0 0
        %1156 = vmatprep.subr.bf16.mxu0 0
        %1157 = vmatpush1.bf16.msra.mxu0 0
        %1158 = vmatprep.subr.bf16.mxu0 0
        %1159 = vmatpush1.bf16.msra.mxu0 0
        %1160 = vmatprep.subr.bf16.mxu0 0
        %1161 = vmatpush1.bf16.msra.mxu0 0
        %1162 = vmatprep.subr.bf16.mxu0 0
        %1163 = vmatpush1.bf16.msra.mxu0 0
        %1164 = vmatprep.subr.bf16.mxu0 0
        %1165 = vmatpush1.bf16.msra.mxu0 0
        %1166 = vmatprep.subr.bf16.mxu0 0
        %1167 = vmatpush1.bf16.msra.mxu0 0
        %1168 = vmatprep.subr.bf16.mxu0 0
        %1169 = vmatpush1.bf16.msra.mxu0 0
        %1170 = vmatprep.subr.bf16.mxu0 0
        %1171 = vmatpush1.bf16.msra.mxu0 0
        %1172 = vmatprep.subr.bf16.mxu0 0
        %1173 = vmatpush1.bf16.msra.mxu0 0
        %1174 = vmatprep.subr.bf16.mxu0 0
        %1175 = vmatpush1.bf16.msra.mxu0 0
        %1176 = vmatprep.subr.bf16.mxu0 0
        %1177 = vmatpush1.bf16.msra.mxu0 0
        %1178 = vmatprep.mubr.bf16.mxu0 0
        %1179 = vmatmul.mubr.bf16.gmra.mrb[0].mxu0 %v1039
        %v1180 = vpop.f32.mrb[0].mxu0
        %v1181 = vadd.f32 %v1132, %v1180
        %v1182 = vpop.f32.mrb[0].mxu0
        %v1183 = vpop.f32.mrb[0].mxu0
        %v1184 = vadd.f32 %v1132, %v1183
        %v1185 = vpop.f32.mrb[0].mxu0
        %1186 = vmatprep.mubr.bf16.mxu0 0
        %1187 = vmatmul.mubr.bf16.gmra.mrb[0].mxu0 %v1042
        %v1188 = vpop.f32.mrb[0].mxu0
        %v1189 = vadd.f32 %v1132, %v1188
        %v1190 = vpop.f32.mrb[0].mxu0
        %v1191 = vpop.f32.mrb[0].mxu0
        %v1192 = vadd.f32 %v1132, %v1191
        %v1193 = vpop.f32.mrb[0].mxu0
        %1194 = vmatprep.mubr.bf16.mxu0 0
        %1195 = vmatmul.mubr.bf16.gmra.mrb[0].mxu0 %v1045
        %v1196 = vpop.f32.mrb[0].mxu0
        %v1197 = vadd.f32 %v1132, %v1196
        %v1198 = vpop.f32.mrb[0].mxu0
        %v1199 = vpop.f32.mrb[0].mxu0
        %v1200 = vadd.f32 %v1132, %v1199
        %v1201 = vpop.f32.mrb[0].mxu0
        %1202 = vmatprep.mubr.bf16.mxu0 0
        %1203 = vmatmul.mubr.bf16.gmra.mrb[0].mxu0 %v1048
        %v1204 = vpop.f32.mrb[0].mxu0
        %v1205 = vadd.f32 %v1132, %v1204
        %v1206 = vpop.f32.mrb[0].mxu0
        %v1207 = vpop.f32.mrb[0].mxu0
        %v1208 = vadd.f32 %v1132, %v1207
        %v1209 = vpop.f32.mrb[0].mxu0
        %1210 = vdwg.mxu0
        %v1220 = vrot.slane 0.0, 7
        %v1221 = vrot.slane %v1115, 7
        %v1222 = vrot.slane %v1116, 7
        %v1223 = vrot.slane %v1117, 7
        %v1224 = vrot.slane %v1118, 7
        %v1225 = vrot.slane %v1119, 7
        %v1226 = vrot.slane %v1120, 7
        %v1227 = vrot.slane %v1121, 7
        %v1228 = vrot.slane %v1122, 7
        %v1238 = vsel %vm698, 0.0, %v1220
        %v1239 = vsel %vm698, 0.0, %v1221
        %v1240 = vsel %vm698, 0.0, %v1222
        %v1241 = vsel %vm698, 0.0, %v1223
        %v1242 = vsel %vm698, 0.0, %v1224
        %v1243 = vsel %vm698, 0.0, %v1225
        %v1244 = vsel %vm698, 0.0, %v1226
        %v1245 = vsel %vm698, 0.0, %v1227
        %v1246 = vsel %vm698, 0.0, %v1228
        %v1247 = vsel %vm698, %v1220, 0.0
        %v1248 = vsel %vm698, %v1221, 0.0
        %v1249 = vsel %vm698, %v1222, 0.0
        %v1250 = vsel %vm698, %v1223, 0.0
        %v1251 = vsel %vm698, %v1224, 0.0
        %v1252 = vsel %vm698, %v1225, 0.0
        %v1253 = vsel %vm698, %v1226, 0.0
        %v1254 = vsel %vm698, %v1227, 0.0
        %v1255 = vsel %vm698, %v1228, 0.0
        %vm1272 = vcmask 1046528
        %v1273 = vrot.slane %v1238, 1
        %v1274 = vrot.slane %v1247, 1
        %v1275 = vsel %vm1272, %v1273, %v1274
        %v1276 = vrot.slane %v1239, 1
        %v1277 = vrot.slane %v1248, 1
        %v1278 = vsel %vm1272, %v1276, %v1277
        %v1279 = vrot.slane %v1240, 1
        %v1280 = vrot.slane %v1249, 1
        %v1281 = vsel %vm1272, %v1279, %v1280
        %v1282 = vrot.slane %v1241, 1
        %v1283 = vrot.slane %v1250, 1
        %v1284 = vsel %vm1272, %v1282, %v1283
        %v1285 = vrot.slane %v1242, 1
        %v1286 = vrot.slane %v1251, 1
        %v1287 = vsel %vm1272, %v1285, %v1286
        %v1288 = vrot.slane %v1243, 1
        %v1289 = vrot.slane %v1252, 1
        %v1290 = vsel %vm1272, %v1288, %v1289
        %v1291 = vrot.slane %v1244, 1
        %v1292 = vrot.slane %v1253, 1
        %v1293 = vsel %vm1272, %v1291, %v1292
        %v1294 = vrot.slane %v1245, 1
        %v1295 = vrot.slane %v1254, 1
        %v1296 = vsel %vm1272, %v1294, %v1295
        %1297 = vrot.lane.b32.xlu0 %v1275, 16
        %v1298 = vpop.permute.xlu0 %1297
        %1299 = vrot.lane.b32.xlu0 %v1278, 16
        %v1300 = vpop.permute.xlu0 %1299
        %1301 = vrot.lane.b32.xlu0 %v1281, 16
        %v1302 = vpop.permute.xlu0 %1301
        %1303 = vrot.lane.b32.xlu0 %v1284, 16
        %v1304 = vpop.permute.xlu0 %1303
        %1305 = vrot.lane.b32.xlu0 %v1287, 16
        %v1306 = vpop.permute.xlu0 %1305
        %1307 = vrot.lane.b32.xlu0 %v1290, 16
        %v1308 = vpop.permute.xlu0 %1307
        %1309 = vrot.lane.b32.xlu0 %v1293, 16
        %v1310 = vpop.permute.xlu0 %1309
        %1311 = vrot.lane.b32.xlu0 %v1296, 16
        %v1312 = vpop.permute.xlu0 %1311
        %vm1321 = vcmask 1045504
        %v1322 = vrot.slane %v1238, 2
        %v1323 = vrot.slane %v1247, 2
        %v1324 = vsel %vm1321, %v1322, %v1323
        %v1325 = vrot.slane %v1239, 2
        %v1326 = vrot.slane %v1248, 2
        %v1327 = vsel %vm1321, %v1325, %v1326
        %v1328 = vrot.slane %v1240, 2
        %v1329 = vrot.slane %v1249, 2
        %v1330 = vsel %vm1321, %v1328, %v1329
        %v1331 = vrot.slane %v1241, 2
        %v1332 = vrot.slane %v1250, 2
        %v1333 = vsel %vm1321, %v1331, %v1332
        %v1334 = vrot.slane %v1242, 2
        %v1335 = vrot.slane %v1251, 2
        %v1336 = vsel %vm1321, %v1334, %v1335
        %v1337 = vrot.slane %v1243, 2
        %v1338 = vrot.slane %v1252, 2
        %v1339 = vsel %vm1321, %v1337, %v1338
        %v1340 = vrot.slane %v1244, 2
        %v1341 = vrot.slane %v1253, 2
        %v1342 = vsel %vm1321, %v1340, %v1341
        %v1343 = vrot.slane %v1245, 2
        %v1344 = vrot.slane %v1254, 2
        %v1345 = vsel %vm1321, %v1343, %v1344
        %1346 = vrot.lane.b32.xlu0 %v1324, 32
        %v1347 = vpop.permute.xlu0 %1346
        %1348 = vrot.lane.b32.xlu0 %v1327, 32
        %v1349 = vpop.permute.xlu0 %1348
        %1350 = vrot.lane.b32.xlu0 %v1330, 32
        %v1351 = vpop.permute.xlu0 %1350
        %1352 = vrot.lane.b32.xlu0 %v1333, 32
        %v1353 = vpop.permute.xlu0 %1352
        %1354 = vrot.lane.b32.xlu0 %v1336, 32
        %v1355 = vpop.permute.xlu0 %1354
        %1356 = vrot.lane.b32.xlu0 %v1339, 32
        %v1357 = vpop.permute.xlu0 %1356
        %1358 = vrot.lane.b32.xlu0 %v1342, 32
        %v1359 = vpop.permute.xlu0 %1358
        %1360 = vrot.lane.b32.xlu0 %v1345, 32
        %v1361 = vpop.permute.xlu0 %1360
        %1371 = vrot.lane.b32.xlu0 %v1239, 48
        %v1372 = vpop.permute.xlu0 %1371
        %1373 = vrot.lane.b32.xlu0 %v1240, 48
        %v1374 = vpop.permute.xlu0 %1373
        %1375 = vrot.lane.b32.xlu0 %v1241, 48
        %v1376 = vpop.permute.xlu0 %1375
        %1377 = vrot.lane.b32.xlu0 %v1242, 48
        %v1378 = vpop.permute.xlu0 %1377
        %1379 = vrot.lane.b32.xlu0 %v1243, 48
        %v1380 = vpop.permute.xlu0 %1379
        %1381 = vrot.lane.b32.xlu0 %v1244, 48
        %v1382 = vpop.permute.xlu0 %1381
        %1383 = vrot.lane.b32.xlu0 %v1245, 48
        %v1384 = vpop.permute.xlu0 %1383
        %1385 = vrot.lane.b32.xlu0 %v1246, 48
        %v1386 = vpop.permute.xlu0 %1385
        %v1396 = vrot.slane %v1246, 1
        %v1397 = vrot.slane %v1255, 1
        %v1398 = vsel %vm1272, %v1396, %v1397
        %1399 = vrot.lane.b32.xlu0 %v1278, 64
        %v1400 = vpop.permute.xlu0 %1399
        %1401 = vrot.lane.b32.xlu0 %v1281, 64
        %v1402 = vpop.permute.xlu0 %1401
        %1403 = vrot.lane.b32.xlu0 %v1284, 64
        %v1404 = vpop.permute.xlu0 %1403
        %1405 = vrot.lane.b32.xlu0 %v1287, 64
        %v1406 = vpop.permute.xlu0 %1405
        %1407 = vrot.lane.b32.xlu0 %v1290, 64
        %v1408 = vpop.permute.xlu0 %1407
        %1409 = vrot.lane.b32.xlu0 %v1293, 64
        %v1410 = vpop.permute.xlu0 %1409
        %1411 = vrot.lane.b32.xlu0 %v1296, 64
        %v1412 = vpop.permute.xlu0 %1411
        %1413 = vrot.lane.b32.xlu0 %v1398, 64
        %v1414 = vpop.permute.xlu0 %1413
        %v1423 = vrot.slane %v1246, 2
        %v1424 = vrot.slane %v1255, 2
        %v1425 = vsel %vm1321, %v1423, %v1424
        %1426 = vrot.lane.b32.xlu0 %v1327, 80
        %v1427 = vpop.permute.xlu0 %1426
        %1428 = vrot.lane.b32.xlu0 %v1330, 80
        %v1429 = vpop.permute.xlu0 %1428
        %1430 = vrot.lane.b32.xlu0 %v1333, 80
        %v1431 = vpop.permute.xlu0 %1430
        %1432 = vrot.lane.b32.xlu0 %v1336, 80
        %v1433 = vpop.permute.xlu0 %1432
        %1434 = vrot.lane.b32.xlu0 %v1339, 80
        %v1435 = vpop.permute.xlu0 %1434
        %1436 = vrot.lane.b32.xlu0 %v1342, 80
        %v1437 = vpop.permute.xlu0 %1436
        %1438 = vrot.lane.b32.xlu0 %v1345, 80
        %v1439 = vpop.permute.xlu0 %1438
        %1440 = vrot.lane.b32.xlu0 %v1425, 80
        %v1441 = vpop.permute.xlu0 %1440
        %1450 = vrot.lane.b32.xlu0 %v1240, 96
        %v1451 = vpop.permute.xlu0 %1450
        %1452 = vrot.lane.b32.xlu0 %v1241, 96
        %v1453 = vpop.permute.xlu0 %1452
        %1454 = vrot.lane.b32.xlu0 %v1242, 96
        %v1455 = vpop.permute.xlu0 %1454
        %1456 = vrot.lane.b32.xlu0 %v1243, 96
        %v1457 = vpop.permute.xlu0 %1456
        %1458 = vrot.lane.b32.xlu0 %v1244, 96
        %v1459 = vpop.permute.xlu0 %1458
        %1460 = vrot.lane.b32.xlu0 %v1245, 96
        %v1461 = vpop.permute.xlu0 %1460
        %1462 = vrot.lane.b32.xlu0 %v1246, 96
        %v1463 = vpop.permute.xlu0 %1462
        %1464 = vrot.lane.b32.xlu0 %v1238, 96
        %v1465 = vpop.permute.xlu0 %1464
        %1474 = vrot.lane.b32.xlu0 %v1281, 112
        %v1475 = vpop.permute.xlu0 %1474
        %1476 = vrot.lane.b32.xlu0 %v1284, 112
        %v1477 = vpop.permute.xlu0 %1476
        %1478 = vrot.lane.b32.xlu0 %v1287, 112
        %v1479 = vpop.permute.xlu0 %1478
        %1480 = vrot.lane.b32.xlu0 %v1290, 112
        %v1481 = vpop.permute.xlu0 %1480
        %1482 = vrot.lane.b32.xlu0 %v1293, 112
        %v1483 = vpop.permute.xlu0 %1482
        %1484 = vrot.lane.b32.xlu0 %v1296, 112
        %v1485 = vpop.permute.xlu0 %1484
        %1486 = vrot.lane.b32.xlu0 %v1398, 112
        %v1487 = vpop.permute.xlu0 %1486
        %1488 = vrot.lane.b32.xlu0 %v1275, 112
        %v1489 = vpop.permute.xlu0 %1488
        %vm1506 = vcmask 130048
        %v1507 = vsel %vm1506, %v1238, %v1298
        %v1508 = vsel %vm1506, %v1239, %v1300
        %v1509 = vsel %vm1506, %v1240, %v1302
        %v1510 = vsel %vm1506, %v1241, %v1304
        %v1511 = vsel %vm1506, %v1242, %v1306
        %v1512 = vsel %vm1506, %v1243, %v1308
        %v1513 = vsel %vm1506, %v1244, %v1310
        %v1514 = vsel %vm1506, %v1245, %v1312
        %v1515 = vsel %vm1037, %v1507, %v1347
        %v1516 = vsel %vm1037, %v1508, %v1349
        %v1517 = vsel %vm1037, %v1509, %v1351
        %v1518 = vsel %vm1037, %v1510, %v1353
        %v1519 = vsel %vm1037, %v1511, %v1355
        %v1520 = vsel %vm1037, %v1512, %v1357
        %v1521 = vsel %vm1037, %v1513, %v1359
        %v1522 = vsel %vm1037, %v1514, %v1361
        %vm1523 = vcmask 392192
        %v1524 = vsel %vm1523, %v1515, %v1372
        %v1525 = vsel %vm1523, %v1516, %v1374
        %v1526 = vsel %vm1523, %v1517, %v1376
        %v1527 = vsel %vm1523, %v1518, %v1378
        %v1528 = vsel %vm1523, %v1519, %v1380
        %v1529 = vsel %vm1523, %v1520, %v1382
        %v1530 = vsel %vm1523, %v1521, %v1384
        %v1531 = vsel %vm1523, %v1522, %v1386
        %vm1532 = vcmask 523264
        %v1533 = vsel %vm1532, %v1524, %v1400
        %v1534 = vsel %vm1532, %v1525, %v1402
        %v1535 = vsel %vm1532, %v1526, %v1404
        %v1536 = vsel %vm1532, %v1527, %v1406
        %v1537 = vsel %vm1532, %v1528, %v1408
        %v1538 = vsel %vm1532, %v1529, %v1410
        %v1539 = vsel %vm1532, %v1530, %v1412
        %v1540 = vsel %vm1532, %v1531, %v1414
        %vm1541 = vcmask 654336
        %v1542 = vsel %vm1541, %v1533, %v1427
        %v1543 = vsel %vm1541, %v1534, %v1429
        %v1544 = vsel %vm1541, %v1535, %v1431
        %v1545 = vsel %vm1541, %v1536, %v1433
        %v1546 = vsel %vm1541, %v1537, %v1435
        %v1547 = vsel %vm1541, %v1538, %v1437
        %v1548 = vsel %vm1541, %v1539, %v1439
        %v1549 = vsel %vm1541, %v1540, %v1441
        %vm1550 = vcmask 785408
        %v1551 = vsel %vm1550, %v1542, %v1451
        %v1552 = vsel %vm1550, %v1543, %v1453
        %v1553 = vsel %vm1550, %v1544, %v1455
        %v1554 = vsel %vm1550, %v1545, %v1457
        %v1555 = vsel %vm1550, %v1546, %v1459
        %v1556 = vsel %vm1550, %v1547, %v1461
        %v1557 = vsel %vm1550, %v1548, %v1463
        %v1558 = vsel %vm1550, %v1549, %v1465
        %vm1559 = vcmask 916480
        %v1560 = vsel %vm1559, %v1551, %v1475
        %v1561 = vsel %vm1559, %v1552, %v1477
        %v1562 = vsel %vm1559, %v1553, %v1479
        %v1563 = vsel %vm1559, %v1554, %v1481
        %v1564 = vsel %vm1559, %v1555, %v1483
        %v1565 = vsel %vm1559, %v1556, %v1485
        %v1566 = vsel %vm1559, %v1557, %v1487
        %v1567 = vsel %vm1559, %v1558, %v1489
        %v1568 = vpack.c.bf16 %v1561, %v1560
        %v1569 = vpack.c.bf16 %v1333, %v1330
        %v1570 = vpack.c.bf16 %v1563, %v1562
        %v1571 = vpack.c.bf16 %v1339, %v1336
        %v1572 = vpack.c.bf16 %v1565, %v1564
        %v1573 = vpack.c.bf16 %v1345, %v1342
        %v1574 = vpack.c.bf16 %v1567, %v1566
        %v1575 = vpack.c.bf16 %v1324, %v1425
        %v1576 = vld [vmem:[%s5] sm:$0xf]
        %v1577 = vld [vmem:[%s5 + $0x4] sm:$0xf]
        %v1578 = vld [vmem:[%s5 + $0x8] sm:$0xf]
        %v1579 = vld [vmem:[%s5 + $0xc] sm:$0xf]
        %v1580 = vld [vmem:[%s5 + $0x10] sm:$0xf]
        %v1581 = vld [vmem:[%s5 + $0x14] sm:$0xf]
        %v1582 = vld [vmem:[%s5 + $0x18] sm:$0xf]
        %v1583 = vld [vmem:[%s5 + $0x1c] sm:$0xf]
        %v1584 = vld [vmem:[%s5 + $0x20] sm:$0xf]
        %v1585 = vld [vmem:[%s5 + $0x24] sm:$0xf]
        %v1586 = vld [vmem:[%s5 + $0x28] sm:$0xf]
        %v1587 = vld [vmem:[%s5 + $0x2c] sm:$0xf]
        %v1588 = vld [vmem:[%s5 + $0x30] sm:$0xf]
        %v1589 = vld [vmem:[%s5 + $0x34] sm:$0xf]
        %v1590 = vld [vmem:[%s5 + $0x38] sm:$0xf]
        %v1591 = vld [vmem:[%s5 + $0x3c] sm:$0xf]
        %v1592 = vld [vmem:[%s5 + $0x40] sm:$0xf]
        %v1593 = vld [vmem:[%s5 + $0x44] sm:$0xf]
        %v1594 = vld [vmem:[%s6] sm:$0x1]
        %v1596 = vlaneseq
        %v1597 = vshrl.u32 %v1596, 7
        %v1598 = vsub.s32 0, %v1597
        %v1599 = vrot.slane %v1594, %v1598
        %v1619 = vunpack.c.l.b16 %v1576
        %v1620 = vunpack.c.l.b16 %v1577
        %v1621 = vunpack.c.l.b16 %v1578
        %v1622 = vunpack.c.l.b16 %v1579
        %v1623 = vunpack.c.l.b16 %v1580
        %v1624 = vunpack.c.l.b16 %v1581
        %v1625 = vunpack.c.l.b16 %v1582
        %v1626 = vunpack.c.l.b16 %v1583
        %v1627 = vunpack.c.l.b16 %v1584
        %v1628 = vunpack.c.l.b16 %v1585
        %v1629 = vunpack.c.l.b16 %v1586
        %v1630 = vunpack.c.l.b16 %v1587
        %v1631 = vunpack.c.l.b16 %v1588
        %v1632 = vunpack.c.l.b16 %v1589
        %v1633 = vunpack.c.l.b16 %v1590
        %v1634 = vunpack.c.l.b16 %v1591
        %v1635 = vunpack.c.l.b16 %v1592
        %v1636 = vunpack.c.l.b16 %v1593
        %v1637 = vpack.c.b16 %v1620, %v1619
        %v1638 = vpack.c.b16 %v1622, %v1621
        %v1639 = vpack.c.b16 %v1624, %v1623
        %v1640 = vpack.c.b16 %v1626, %v1625
        %v1641 = vpack.c.b16 %v1628, %v1627
        %v1642 = vpack.c.b16 %v1630, %v1629
        %v1643 = vpack.c.b16 %v1632, %v1631
        %v1644 = vpack.c.b16 %v1634, %v1633
        %v1645 = vpack.c.b16 %v1636, %v1635
        %v1656 = vsel %vm1506, %v1569, 0
        %v1659 = vsel %vm1506, %v1571, 0
        %v1662 = vsel %vm1506, %v1573, 0
        %v1665 = vsel %vm1506, %v1575, 0
        %1667 = vmatprep.subr.bf16.mxu0 0
        %1668 = vmatpush1.bf16.msra.mxu0 %v1637
        %1669 = vmatprep.subr.bf16.mxu0 0
        %1670 = vmatpush1.bf16.msra.mxu0 %v1638
        %1671 = vmatprep.subr.bf16.mxu0 0
        %1672 = vmatpush1.bf16.msra.mxu0 %v1639
        %1673 = vmatprep.subr.bf16.mxu0 0
        %1674 = vmatpush1.bf16.msra.mxu0 %v1640
        %1675 = vmatprep.subr.bf16.mxu0 0
        %1676 = vmatpush1.bf16.msra.mxu0 %v1641
        %1677 = vmatprep.subr.bf16.mxu0 0
        %1678 = vmatpush1.bf16.msra.mxu0 %v1642
        %1679 = vmatprep.subr.bf16.mxu0 0
        %1680 = vmatpush1.bf16.msra.mxu0 %v1643
        %1681 = vmatprep.subr.bf16.mxu0 0
        %1682 = vmatpush1.bf16.msra.mxu0 %v1644
        %1683 = vmatprep.subr.bf16.mxu0 0
        %1684 = vmatpush1.bf16.msra.mxu0 %v1645
        %1685 = vmatprep.subr.bf16.mxu0 0
        %1686 = vmatpush1.bf16.msra.mxu0 0
        %1687 = vmatprep.subr.bf16.mxu0 0
        %1688 = vmatpush1.bf16.msra.mxu0 0
        %1689 = vmatprep.subr.bf16.mxu0 0
        %1690 = vmatpush1.bf16.msra.mxu0 0
        %1691 = vmatprep.subr.bf16.mxu0 0
        %1692 = vmatpush1.bf16.msra.mxu0 0
        %1693 = vmatprep.subr.bf16.mxu0 0
        %1694 = vmatpush1.bf16.msra.mxu0 0
        %1695 = vmatprep.subr.bf16.mxu0 0
        %1696 = vmatpush1.bf16.msra.mxu0 0
        %1697 = vmatprep.subr.bf16.mxu0 0
        %1698 = vmatpush1.bf16.msra.mxu0 0
        %1699 = vmatprep.mubr.bf16.mxu0 %v1656
        %1700 = vmatmul.mubr.bf16.gmra.mrb[0].mxu0 %v1568
        %v1701 = vpop.f32.mrb[0].mxu0
        %v1702 = vadd.f32 %v1599, %v1701
        %v1703 = vpop.f32.mrb[0].mxu0
        %v1704 = vpop.f32.mrb[0].mxu0
        %v1705 = vadd.f32 %v1599, %v1704
        %v1706 = vpop.f32.mrb[0].mxu0
        %1707 = vmatprep.mubr.bf16.mxu0 %v1659
        %1708 = vmatmul.mubr.bf16.gmra.mrb[0].mxu0 %v1570
        %v1709 = vpop.f32.mrb[0].mxu0
        %v1710 = vadd.f32 %v1599, %v1709
        %v1711 = vpop.f32.mrb[0].mxu0
        %v1712 = vpop.f32.mrb[0].mxu0
        %v1713 = vadd.f32 %v1599, %v1712
        %v1714 = vpop.f32.mrb[0].mxu0
        %1715 = vmatprep.mubr.bf16.mxu0 %v1662
        %1716 = vmatmul.mubr.bf16.gmra.mrb[0].mxu0 %v1572
        %v1717 = vpop.f32.mrb[0].mxu0
        %v1718 = vadd.f32 %v1599, %v1717
        %v1719 = vpop.f32.mrb[0].mxu0
        %v1720 = vpop.f32.mrb[0].mxu0
        %v1721 = vadd.f32 %v1599, %v1720
        %v1722 = vpop.f32.mrb[0].mxu0
        %1723 = vmatprep.mubr.bf16.mxu0 %v1665
        %1724 = vmatmul.mubr.bf16.gmra.mrb[0].mxu0 %v1574
        %v1725 = vpop.f32.mrb[0].mxu0
        %v1726 = vadd.f32 %v1599, %v1725
        %v1727 = vpop.f32.mrb[0].mxu0
        %v1728 = vpop.f32.mrb[0].mxu0
        %v1729 = vadd.f32 %v1599, %v1728
        %v1730 = vpop.f32.mrb[0].mxu0
        %1731 = vdwg.mxu0
        %v1732 = vmax.f32 %v1702, 0.0
        %v1733 = vmax.f32 %v1705, 0.0
        %v1734 = vmax.f32 %v1710, 0.0
        %v1735 = vmax.f32 %v1713, 0.0
        %v1736 = vmax.f32 %v1718, 0.0
        %v1737 = vmax.f32 %v1721, 0.0
        %v1738 = vmax.f32 %v1726, 0.0
        %v1739 = vmax.f32 %v1729, 0.0
        %v1740 = vpack.c.bf16 %v1733, %v1732
        %v1741 = vpack.c.bf16 %v1735, %v1734
        %v1742 = vpack.c.bf16 %v1737, %v1736
        %v1743 = vpack.c.bf16 %v1739, %v1738
        %v1744 = vld [vmem:[%s7] sm:$0xf]
        %v1745 = vld [vmem:[%s7 + $0x4] sm:$0xf]
        %v1746 = vld [vmem:[%s8] sm:$0x1]
        %v1748 = vlaneseq
        %v1749 = vshrl.u32 %v1748, 7
        %v1750 = vsub.s32 0, %v1749
        %v1751 = vrot.slane %v1746, %v1750
        %v1755 = vunpack.c.l.b16 %v1744
        %v1756 = vunpack.c.l.b16 %v1745
        %v1757 = vpack.c.b16 %v1756, %v1755
        %v1760 = vsel %vm1506, %v1740, 0
        %v1763 = vsel %vm1506, %v1741, 0
        %v1766 = vsel %vm1506, %v1742, 0
        %v1769 = vsel %vm1506, %v1743, 0
        %1771 = vmatprep.subr.bf16.mxu0 0
        %1772 = vmatpush1.bf16.msra.mxu0 %v1757
        %1773 = vmatprep.subr.bf16.mxu0 0
        %1774 = vmatpush1.bf16.msra.mxu0 0
        %1775 = vmatprep.subr.bf16.mxu0 0
        %1776 = vmatpush1.bf16.msra.mxu0 0
        %1777 = vmatprep.subr.bf16.mxu0 0
        %1778 = vmatpush1.bf16.msra.mxu0 0
        %1779 = vmatprep.subr.bf16.mxu0 0
        %1780 = vmatpush1.bf16.msra.mxu0 0
        %1781 = vmatprep.subr.bf16.mxu0 0
        %1782 = vmatpush1.bf16.msra.mxu0 0
        %1783 = vmatprep.subr.bf16.mxu0 0
        %1784 = vmatpush1.bf16.msra.mxu0 0
        %1785 = vmatprep.subr.bf16.mxu0 0
        %1786 = vmatpush1.bf16.msra.mxu0 0
        %1787 = vmatprep.subr.bf16.mxu0 0
        %1788 = vmatpush1.bf16.msra.mxu0 0
        %1789 = vmatprep.subr.bf16.mxu0 0
        %1790 = vmatpush1.bf16.msra.mxu0 0
        %1791 = vmatprep.subr.bf16.mxu0 0
        %1792 = vmatpush1.bf16.msra.mxu0 0
        %1793 = vmatprep.subr.bf16.mxu0 0
        %1794 = vmatpush1.bf16.msra.mxu0 0
        %1795 = vmatprep.subr.bf16.mxu0 0
        %1796 = vmatpush1.bf16.msra.mxu0 0
        %1797 = vmatprep.subr.bf16.mxu0 0
        %1798 = vmatpush1.bf16.msra.mxu0 0
        %1799 = vmatprep.subr.bf16.mxu0 0
        %1800 = vmatpush1.bf16.msra.mxu0 0
        %1801 = vmatprep.subr.bf16.mxu0 0
        %1802 = vmatpush1.bf16.msra.mxu0 0
        %1803 = vmatprep.mubr.bf16.mxu0 0
        %1804 = vmatmul.mubr.bf16.gmra.mrb[0].mxu0 %v1760
        %v1805 = vpop.f32.mrb[0].mxu0
        %v1806 = vadd.f32 %v1751, %v1805
        %v1807 = vpop.f32.mrb[0].mxu0
        %v1808 = vpop.f32.mrb[0].mxu0
        %v1809 = vadd.f32 %v1751, %v1808
        %v1810 = vpop.f32.mrb[0].mxu0
        %1811 = vmatprep.mubr.bf16.mxu0 0
        %1812 = vmatmul.mubr.bf16.gmra.mrb[0].mxu0 %v1763
        %v1813 = vpop.f32.mrb[0].mxu0
        %v1814 = vadd.f32 %v1751, %v1813
        %v1815 = vpop.f32.mrb[0].mxu0
        %v1816 = vpop.f32.mrb[0].mxu0
        %v1817 = vadd.f32 %v1751, %v1816
        %v1818 = vpop.f32.mrb[0].mxu0
        %1819 = vmatprep.mubr.bf16.mxu0 0
        %1820 = vmatmul.mubr.bf16.gmra.mrb[0].mxu0 %v1766
        %v1821 = vpop.f32.mrb[0].mxu0
        %v1822 = vadd.f32 %v1751, %v1821
        %v1823 = vpop.f32.mrb[0].mxu0
        %v1824 = vpop.f32.mrb[0].mxu0
        %v1825 = vadd.f32 %v1751, %v1824
        %v1826 = vpop.f32.mrb[0].mxu0
        %1827 = vmatprep.mubr.bf16.mxu0 0
        %1828 = vmatmul.mubr.bf16.gmra.mrb[0].mxu0 %v1769
        %v1829 = vpop.f32.mrb[0].mxu0
        %v1830 = vadd.f32 %v1751, %v1829
        %v1831 = vpop.f32.mrb[0].mxu0
        %v1832 = vpop.f32.mrb[0].mxu0
        %v1833 = vadd.f32 %v1751, %v1832
        %v1834 = vpop.f32.mrb[0].mxu0
        %1835 = vdwg.mxu0
        %v1836 = vadd.f32 %v1806, %v1181
        %v1837 = vadd.f32 %v1809, %v1184
        %v1838 = vadd.f32 %v1814, %v1189
        %v1839 = vadd.f32 %v1817, %v1192
        %v1840 = vadd.f32 %v1822, %v1197
        %v1841 = vadd.f32 %v1825, %v1200
        %v1842 = vadd.f32 %v1830, %v1205
        %v1843 = vadd.f32 %v1833, %v1208
        %v1844 = vmax.f32 %v1836, 0.0
        %v1845 = vmax.f32 %v1837, 0.0
        %v1846 = vmax.f32 %v1838, 0.0
        %v1847 = vmax.f32 %v1839, 0.0
        %v1848 = vmax.f32 %v1840, 0.0
        %v1849 = vmax.f32 %v1841, 0.0
        %v1850 = vmax.f32 %v1842, 0.0
        %v1851 = vmax.f32 %v1843, 0.0
        %v1852 = vsel %vm1532, %v1844, 0.0
        %v1853 = vsel %vm1532, %v1845, 0.0
        %v1854 = vadd.f32 %v1852, %v1853
        %v1855 = vsel %vm1532, %v1846, 0.0
        %v1856 = vadd.f32 %v1854, %v1855
        %v1857 = vsel %vm1532, %v1847, 0.0
        %v1858 = vadd.f32 %v1856, %v1857
        %v1859 = vsel %vm1532, %v1848, 0.0
        %v1860 = vadd.f32 %v1858, %v1859
        %v1861 = vsel %vm1532, %v1849, 0.0
        %v1862 = vadd.f32 %v1860, %v1861
        %v1863 = vsel %vm1532, %v1850, 0.0
        %v1864 = vadd.f32 %v1862, %v1863
        %v1865 = vsel %vm1532, %v1851, 0.0
        %v1866 = vadd.f32 %v1864, %v1865
        %v1867 = vrot.slane %v1866, 4
        %v1868 = vadd.f32 %v1866, %v1867
        %v1869 = vrot.slane %v1868, 2
        %v1870 = vadd.f32 %v1868, %v1869
        %v1871 = vrot.slane %v1870, 1
        %v1872 = vadd.f32 %v1870, %v1871
        %v1873 = vrcp.pop 64.0
        %v1874 = vmul.f32 %v1872, %v1873
        %vm1875 = vcmask 516096
        %1876 = vst.msk [vmem:[%s381] sm:$0x1] %vm1875, %v1874
        %s1877 = sand.u32 %s269, 1
        %s1878 = scalar_lea.sflag [#allocation3], %s1877
        %s1879 = sand.u32 %s269, 1
        %s1880 = scalar_lea.vmem [#allocation2], %s1879
        // Predicated region
        $region65: #{image_encoder_forward.1} parent=63 // pred_check
          %p1881 = pneg %p279
        $region66: #{image_encoder_forward.1} parent=63 // pred_check_branch
          %1883 = sbr.rel (%p1881) target = $region68
        $region67: #{image_encoder_forward.1} parent=63 // pred_region
          %s1885 = ssub.s32 16, 16
          %1886 = vsyncadd %s1878, %s1885
          %s1887 = smul.addr %s25, 16
          %s1888 = scalar_lea.hbm %s11, %s1887
          %s1890 = sshll.u32 %s1880, 4
          %s1891 = int_to_ptr.vmem [resolvable:$true] %s1890
          %1893 = dma.vmem_to_hbm [thread:$0]  %s1891, 16, %s1888, %s1878
        $region68: #{image_encoder_forward.1} parent=63 // pred_fallthru
          _
      $region64: #{image_encoder_forward.1} parent=5 // pred_fallthru
        _
      %p1894 = scmp.le.s32.totalorder 2, %s20
      // Predicated region
      $region69: #{image_encoder_forward.1} parent=5 // pred_check
        %p1895 = pneg %p1894
      $region70: #{image_encoder_forward.1} parent=5 // pred_check_branch
        %1897 = sbr.rel (%p1895) target = $region72
      $region71: #{image_encoder_forward.1} parent=5 // pred_region
        %s1898 = ssub.s32 %s20, 2
        // Predicated region
        $region73: #{image_encoder_forward.1} parent=71 // pred_check
          %p1899 = pneg %p285
        $region74: #{image_encoder_forward.1} parent=71 // pred_check_branch
          %1901 = sbr.rel (%p1899) target = $region76
        $region75: #{image_encoder_forward.1} parent=71 // pred_region
          %s1902 = sand.u32 %s270, 1
          %s1903 = scalar_lea.sflag [#allocation3], %s1902
          %s1904 = sand.u32 %s270, 1
          %s1905 = scalar_lea.vmem [#allocation2], %s1904
          %1906 = dma.done %s1903, 16
        $region76: #{image_encoder_forward.1} parent=71 // pred_fallthru
          _
      $region72: #{image_encoder_forward.1} parent=5 // pred_fallthru
        _
    $region6: #{image_encoder_forward.1} parent=1 // loop_footer
      %s24 = sadd.s32 1, %s20
    $region7: #{image_encoder_forward.1} parent=1 // loop_footer_branch
      %19 = sbr.rel target = $region3
    $region8: #{image_encoder_forward.1} parent=1 // loop_exit
      _
    %1907 = vsyncpa [#allocation3], 1
    %s1908 = scalar_lea.sflag [#allocation3], 1
    %1909 = vsyncpa %s1908, 1

</llo_original>
